<compile_context>
chip_gen: v7x
topology: tpu7x:2x2x1
jax: 0.10.0
libtpu: 0.0.40
codegen_flags: <defaults>
</compile_context>

<pallas_src>
import functools

import jax
import jax.numpy as jnp
from jax.experimental import pallas as pl
from jax.experimental.pallas import tpu as pltpu

# (in_features, out_features) per nn.Linear, mirroring NETWORK_SHAPE.
NETWORK_SHAPE = [
    (8, 32),
    (32, 32),
    (32, 32),
    (32, 32),
    (32, 32),
    (32, 32),
    (32, 32),
    (32, 4),
]
NUM_LAYERS = len(NETWORK_SHAPE)
LANE = 128                       # TPU lane width
IN_DIM = NETWORK_SHAPE[0][0]     # 8
OUT_DIM = NETWORK_SHAPE[-1][1]   # 4


def _round_up(n, m):
    return ((n + m - 1) // m) * m


def _mlp_kernel(x_ref, w0_ref, wstk_ref, bstk_ref, o_ref):
    """One batch tile of the fused 8-layer MLP.

    x_ref   : (tb, 8)        f32   — streamed per grid step
    w0_ref  : (8, 128)       f32   — layer-0 weight (kept f32 in HBM; cast here — tiny)
    wstk_ref: (7, 128, 128)  bf16  — layers 1..7 weights, VMEM-resident across the grid
    bstk_ref: (8, 128)       f32   — all biases, VMEM-resident
    o_ref   : (tb, 4)        f32   — Q-values for this tile (lane-narrow, low writeback)

    MXU operands are bf16; accumulation / bias / ReLU are f32.  The last layer skips ReLU,
    matching the PyTorch forward exactly.
    """
    h = x_ref[...]                                              # (tb, 8) f32

    # Layer 0: in_dim=8 -> 128 padded lanes.
    w0 = w0_ref[...].astype(jnp.bfloat16)
    h = jnp.dot(h.astype(jnp.bfloat16), w0, preferred_element_type=jnp.float32)
    h = jnp.maximum(h + bstk_ref[0], 0.0)                       # f32 bias + ReLU

    # Layers 1..7: 128 -> 128 padded, bf16 MXU operands, f32 accumulate.
    for layer in range(1, NUM_LAYERS):
        w = wstk_ref[layer - 1]                                 # (128, 128) bf16
        h = jnp.dot(h.astype(jnp.bfloat16), w, preferred_element_type=jnp.float32)
        h = h + bstk_ref[layer]
        if layer != NUM_LAYERS - 1:
            h = jnp.maximum(h, 0.0)

    # Only the 4 real Q-value lanes are written back.
    o_ref[...] = h[:, :OUT_DIM].astype(o_ref.dtype)


def pack_params(params):
    """Pack the flat (w0, b0, ..., w7, b7) params into 3 MXU-ready arrays (do this ONCE,
    outside the RL step loop):

      w0_p   : (8, 128)       f32   layer-0 weight, out-dim zero-padded to 128 lanes
      w_stack: (7, 128, 128)  bf16  layers 1..7 weights, in/out zero-padded to 128
      b_stack: (8, 128)       f32   all biases, zero-padded to 128 lanes

    Zero padding keeps the math exact; biases stay f32 so bias-add/ReLU run natively on
    the VPU (bf16 elementwise is emulated on v5e).
    """
    w0, b0 = params[0], params[1]
    fo0 = NETWORK_SHAPE[0][1]
    w0_p = jnp.zeros((IN_DIM, LANE), jnp.float32).at[:, :fo0].set(w0)

    w_stack = jnp.zeros((NUM_LAYERS - 1, LANE, LANE), jnp.bfloat16)
    b_stack = jnp.zeros((NUM_LAYERS, LANE), jnp.float32)
    b_stack = b_stack.at[0, :fo0].set(jnp.reshape(b0, (-1,)))
    for layer in range(1, NUM_LAYERS):
        fi, fo = NETWORK_SHAPE[layer]
        w, b = params[2 * layer], params[2 * layer + 1]
        w_stack = w_stack.at[layer - 1, :fi, :fo].set(w.astype(jnp.bfloat16))
        b_stack = b_stack.at[layer, :fo].set(jnp.reshape(b, (-1,)))
    return w0_p, w_stack, b_stack


def _choose_tb(batch):
    """Default batch tile: exactly 2 tiles (engages both v7x TensorCores via the
    "parallel" grid axis; costs nothing on single-TC v5e/v6e), capped at 1024 rows so the
    f32 activation chain stays comfortably VMEM-resident on every generation."""
    padded = _round_up(batch, 8)
    tb = _round_up((padded + 1) // 2, 8)
    return max(8, min(tb, 1024))


@functools.partial(jax.jit, static_argnames=("tb",))
def qnetwork_forward(x, packed_params, *, tb=None):
    """x: (batch, 8) f32; packed_params: output of pack_params().  Returns (batch, 4) f32
    Q-values.

    tb: per-grid-step batch tile (multiple of 8).  Default splits the batch into exactly
    2 tiles (<=1024 rows each).  For large replay batches sweep tb in 512..1024
    (v6e prefers >=256 rows to fill MXU rows).
    """
    assert x.ndim == 2 and x.shape[1] == IN_DIM
    batch = x.shape[0]
    if tb is None:
        tb = _choose_tb(batch)
    assert tb % 8 == 0 and tb >= 8, "batch tile must be a positive multiple of 8"

    w0_p, w_stack, b_stack = packed_params

    # Pad batch to a multiple of the tile; extra rows are sliced off at the end.
    padded_batch = _round_up(batch, tb)
    if padded_batch != batch:
        x = jnp.pad(x, ((0, padded_batch - batch), (0, 0)))

    grid = (padded_batch // tb,)

    in_specs = [
        pl.BlockSpec((tb, IN_DIM), lambda i: (i, 0)),        # x streams per grid step
        pl.BlockSpec(w0_p.shape, lambda i: (0, 0)),          # resident weights/biases:
        pl.BlockSpec(w_stack.shape, lambda i: (0, 0, 0)),    # constant index_map => DMA'd
        pl.BlockSpec(b_stack.shape, lambda i: (0, 0)),       # once, stay in VMEM
    ]

    out = pl.pallas_call(
        _mlp_kernel,
        out_shape=jax.ShapeDtypeStruct((padded_batch, OUT_DIM), jnp.float32),
        grid=grid,
        in_specs=in_specs,
        out_specs=pl.BlockSpec((tb, OUT_DIM), lambda i: (i, 0)),
        compiler_params=pltpu.CompilerParams(
            # Batch tiles are independent -> shard across TensorCores (2 on v7x).
            dimension_semantics=("parallel",),
        ),
    )(x, w0_p, w_stack, b_stack)

    # TODO(synk): for the RL action-selection path, fuse the 4-lane argmax into the kernel
    # (restricted to the 4 real lanes, masking padded batch rows) so the output is one
    # int32 per row; here we return Q-values to match the PyTorch module's forward.
    return out[:batch]


def init_params(key):
    """Deterministic parameter init mimicking PyTorch nn.Linear default:
    uniform(-1/sqrt(fan_in), 1/sqrt(fan_in)) for both weight and bias."""
    params = []
    for (fan_in, fan_out) in NETWORK_SHAPE:
        key, kw, kb = jax.random.split(key, 3)
        bound = 1.0 / (fan_in ** 0.5)
        # Stored directly as (in, out) — equivalent to PyTorch weight.T.
        w = jax.random.uniform(kw, (fan_in, fan_out), jnp.float32, -bound, bound)
        b = jax.random.uniform(kb, (1, fan_out), jnp.float32, -bound, bound)
        params.extend([w, b])
    return tuple(params)


def reference_forward(x, params):
    """Pure-JAX f32 reference with the exact module semantics."""
    h = x
    for layer in range(NUM_LAYERS):
        w, b = params[2 * layer], params[2 * layer + 1]
        h = h @ w + b
        if layer != NUM_LAYERS - 1:
            h = jnp.maximum(h, 0.0)
    return h


def reference_forward_bf16(x, params):
    """Pure-JAX reference using the same numerics as the kernel (bf16 MXU operands,
    f32 accumulation / bias / ReLU) — tight-tolerance check of the kernel itself."""
    h = x
    for layer in range(NUM_LAYERS):
        w, b = params[2 * layer], params[2 * layer + 1]
        h = jnp.dot(h.astype(jnp.bfloat16), w.astype(jnp.bfloat16),
                    preferred_element_type=jnp.float32) + b
        if layer != NUM_LAYERS - 1:
            h = jnp.maximum(h, 0.0)
    return h


if __name__ == "__main__":
    key = jax.random.PRNGKey(0)
    key, kx = jax.random.split(key)

    batch = 250   # exercises batch padding (tb=128, grid=2) and the trailing row slice
    x = jax.random.normal(kx, (batch, IN_DIM), jnp.float32)

    params = init_params(key)
    packed = pack_params(params)          # one-time packing, outside the step loop

    out = jax.block_until_ready(qnetwork_forward(x, packed))
    assert out.shape == (batch, OUT_DIM)

    # Tight check against a reference using identical numerics (bf16 MXU operands).
    ref_bf16 = reference_forward_bf16(x, params)
    assert jnp.allclose(out, ref_bf16, atol=1e-4, rtol=1e-4), \
        float(jnp.max(jnp.abs(out - ref_bf16)))

    # Loose check against the full-f32 module semantics (bf16 MXU rounding only).
    ref_f32 = reference_forward(x, params)
    assert jnp.allclose(out, ref_f32, atol=1e-1, rtol=1e-1), \
        float(jnp.max(jnp.abs(out - ref_f32)))

    print("KERNEL_OK")
</pallas_src>

<mosaic_0001>
module attributes {stable_mosaic.version = 11 : i64} {
  func.func @_mlp_kernel(%arg0: i32, %arg1: memref<128x8xf32, #tpu.memory_space<vmem>>, %arg2: memref<8x128xf32, #tpu.memory_space<vmem>>, %arg3: memref<7x128x128xbf16, #tpu.memory_space<vmem>>, %arg4: memref<8x128xf32, #tpu.memory_space<vmem>>, %arg5: memref<128x4xf32, #tpu.memory_space<vmem>>) attributes {dimension_semantics = [#tpu.dimension_semantics<parallel>], iteration_bounds = array<i64: 2>, scalar_prefetch = 0 : i64, scratch_operands = 0 : i64, tpu.core_type = #tpu.core_type<tc>, window_params = [{transform_indices = @transform_0, window_bounds = array<i64: 128, 8>}, {pipeline_mode = #tpu.pipeline_mode<synchronous>, transform_indices = @transform_1, window_bounds = array<i64: 8, 128>}, {pipeline_mode = #tpu.pipeline_mode<synchronous>, transform_indices = @transform_2, window_bounds = array<i64: 7, 128, 128>}, {pipeline_mode = #tpu.pipeline_mode<synchronous>, transform_indices = @transform_3, window_bounds = array<i64: 8, 128>}, {transform_indices = @transform_4, window_bounds = array<i64: 128, 4>}]} {
    %c0 = arith.constant 0 : index
    %c0_0 = arith.constant 0 : index
    %0 = vector.load %arg1[%c0, %c0_0] : memref<128x8xf32, #tpu.memory_space<vmem>>, vector<128x8xf32>
    %c0_1 = arith.constant 0 : index
    %c0_2 = arith.constant 0 : index
    %1 = vector.load %arg2[%c0_1, %c0_2] : memref<8x128xf32, #tpu.memory_space<vmem>>, vector<8x128xf32>
    %2 = arith.truncf %1 : vector<8x128xf32> to vector<8x128xbf16>
    %3 = arith.truncf %0 : vector<128x8xf32> to vector<128x8xbf16>
    %cst = arith.constant dense<0.000000e+00> : vector<128x128xf32>
    %4 = tpu.matmul %3, %2, %cst {dimension_numbers = #tpu.dot_dimension_numbers<[1], [0], [0], [1], [0, 0, 1, 1], [], []>} : vector<128x8xbf16>, vector<8x128xbf16>, vector<128x128xf32> -> vector<128x128xf32>
    %c0_3 = arith.constant 0 : index
    %c0_4 = arith.constant 0 : index
    %5 = vector.load %arg4[%c0_3, %c0_4] : memref<8x128xf32, #tpu.memory_space<vmem>>, vector<1x128xf32>
    %6 = vector.shape_cast %5 : vector<1x128xf32> to vector<128xf32>
    %7 = vector.shape_cast %6 : vector<128xf32> to vector<1x128xf32>
    %8 = vector.broadcast %7 : vector<1x128xf32> to vector<128x128xf32>
    %9 = arith.addf %4, %8 : vector<128x128xf32>
    %cst_5 = arith.constant 0.000000e+00 : f32
    %10 = vector.broadcast %cst_5 : f32 to vector<128x128xf32>
    %11 = arith.maximumf %9, %10 : vector<128x128xf32>
    %c0_6 = arith.constant 0 : index
    %c0_7 = arith.constant 0 : index
    %c0_8 = arith.constant 0 : index
    %12 = vector.load %arg3[%c0_6, %c0_7, %c0_8] : memref<7x128x128xbf16, #tpu.memory_space<vmem>>, vector<1x128x128xbf16>
    %13 = vector.shape_cast %12 : vector<1x128x128xbf16> to vector<128x128xbf16>
    %14 = arith.truncf %11 : vector<128x128xf32> to vector<128x128xbf16>
    %cst_9 = arith.constant dense<0.000000e+00> : vector<128x128xf32>
    %15 = tpu.matmul %14, %13, %cst_9 {dimension_numbers = #tpu.dot_dimension_numbers<[1], [0], [0], [1], [0, 0, 1, 1], [], []>} : vector<128x128xbf16>, vector<128x128xbf16>, vector<128x128xf32> -> vector<128x128xf32>
    %c1 = arith.constant 1 : index
    %c0_10 = arith.constant 0 : index
    %16 = vector.load %arg4[%c1, %c0_10] : memref<8x128xf32, #tpu.memory_space<vmem>>, vector<1x128xf32>
    %17 = vector.shape_cast %16 : vector<1x128xf32> to vector<128xf32>
    %18 = vector.shape_cast %17 : vector<128xf32> to vector<1x128xf32>
    %19 = vector.broadcast %18 : vector<1x128xf32> to vector<128x128xf32>
    %20 = arith.addf %15, %19 : vector<128x128xf32>
    %cst_11 = arith.constant 0.000000e+00 : f32
    %21 = vector.broadcast %cst_11 : f32 to vector<128x128xf32>
    %22 = arith.maximumf %20, %21 : vector<128x128xf32>
    %c1_12 = arith.constant 1 : index
    %c0_13 = arith.constant 0 : index
    %c0_14 = arith.constant 0 : index
    %23 = vector.load %arg3[%c1_12, %c0_13, %c0_14] : memref<7x128x128xbf16, #tpu.memory_space<vmem>>, vector<1x128x128xbf16>
    %24 = vector.shape_cast %23 : vector<1x128x128xbf16> to vector<128x128xbf16>
    %25 = arith.truncf %22 : vector<128x128xf32> to vector<128x128xbf16>
    %cst_15 = arith.constant dense<0.000000e+00> : vector<128x128xf32>
    %26 = tpu.matmul %25, %24, %cst_15 {dimension_numbers = #tpu.dot_dimension_numbers<[1], [0], [0], [1], [0, 0, 1, 1], [], []>} : vector<128x128xbf16>, vector<128x128xbf16>, vector<128x128xf32> -> vector<128x128xf32>
    %c2 = arith.constant 2 : index
    %c0_16 = arith.constant 0 : index
    %27 = vector.load %arg4[%c2, %c0_16] : memref<8x128xf32, #tpu.memory_space<vmem>>, vector<1x128xf32>
    %28 = vector.shape_cast %27 : vector<1x128xf32> to vector<128xf32>
    %29 = vector.shape_cast %28 : vector<128xf32> to vector<1x128xf32>
    %30 = vector.broadcast %29 : vector<1x128xf32> to vector<128x128xf32>
    %31 = arith.addf %26, %30 : vector<128x128xf32>
    %cst_17 = arith.constant 0.000000e+00 : f32
    %32 = vector.broadcast %cst_17 : f32 to vector<128x128xf32>
    %33 = arith.maximumf %31, %32 : vector<128x128xf32>
    %c2_18 = arith.constant 2 : index
    %c0_19 = arith.constant 0 : index
    %c0_20 = arith.constant 0 : index
    %34 = vector.load %arg3[%c2_18, %c0_19, %c0_20] : memref<7x128x128xbf16, #tpu.memory_space<vmem>>, vector<1x128x128xbf16>
    %35 = vector.shape_cast %34 : vector<1x128x128xbf16> to vector<128x128xbf16>
    %36 = arith.truncf %33 : vector<128x128xf32> to vector<128x128xbf16>
    %cst_21 = arith.constant dense<0.000000e+00> : vector<128x128xf32>
    %37 = tpu.matmul %36, %35, %cst_21 {dimension_numbers = #tpu.dot_dimension_numbers<[1], [0], [0], [1], [0, 0, 1, 1], [], []>} : vector<128x128xbf16>, vector<128x128xbf16>, vector<128x128xf32> -> vector<128x128xf32>
    %c3 = arith.constant 3 : index
    %c0_22 = arith.constant 0 : index
    %38 = vector.load %arg4[%c3, %c0_22] : memref<8x128xf32, #tpu.memory_space<vmem>>, vector<1x128xf32>
    %39 = vector.shape_cast %38 : vector<1x128xf32> to vector<128xf32>
    %40 = vector.shape_cast %39 : vector<128xf32> to vector<1x128xf32>
    %41 = vector.broadcast %40 : vector<1x128xf32> to vector<128x128xf32>
    %42 = arith.addf %37, %41 : vector<128x128xf32>
    %cst_23 = arith.constant 0.000000e+00 : f32
    %43 = vector.broadcast %cst_23 : f32 to vector<128x128xf32>
    %44 = arith.maximumf %42, %43 : vector<128x128xf32>
    %c3_24 = arith.constant 3 : index
    %c0_25 = arith.constant 0 : index
    %c0_26 = arith.constant 0 : index
    %45 = vector.load %arg3[%c3_24, %c0_25, %c0_26] : memref<7x128x128xbf16, #tpu.memory_space<vmem>>, vector<1x128x128xbf16>
    %46 = vector.shape_cast %45 : vector<1x128x128xbf16> to vector<128x128xbf16>
    %47 = arith.truncf %44 : vector<128x128xf32> to vector<128x128xbf16>
    %cst_27 = arith.constant dense<0.000000e+00> : vector<128x128xf32>
    %48 = tpu.matmul %47, %46, %cst_27 {dimension_numbers = #tpu.dot_dimension_numbers<[1], [0], [0], [1], [0, 0, 1, 1], [], []>} : vector<128x128xbf16>, vector<128x128xbf16>, vector<128x128xf32> -> vector<128x128xf32>
    %c4 = arith.constant 4 : index
    %c0_28 = arith.constant 0 : index
    %49 = vector.load %arg4[%c4, %c0_28] : memref<8x128xf32, #tpu.memory_space<vmem>>, vector<1x128xf32>
    %50 = vector.shape_cast %49 : vector<1x128xf32> to vector<128xf32>
    %51 = vector.shape_cast %50 : vector<128xf32> to vector<1x128xf32>
    %52 = vector.broadcast %51 : vector<1x128xf32> to vector<128x128xf32>
    %53 = arith.addf %48, %52 : vector<128x128xf32>
    %cst_29 = arith.constant 0.000000e+00 : f32
    %54 = vector.broadcast %cst_29 : f32 to vector<128x128xf32>
    %55 = arith.maximumf %53, %54 : vector<128x128xf32>
    %c4_30 = arith.constant 4 : index
    %c0_31 = arith.constant 0 : index
    %c0_32 = arith.constant 0 : index
    %56 = vector.load %arg3[%c4_30, %c0_31, %c0_32] : memref<7x128x128xbf16, #tpu.memory_space<vmem>>, vector<1x128x128xbf16>
    %57 = vector.shape_cast %56 : vector<1x128x128xbf16> to vector<128x128xbf16>
    %58 = arith.truncf %55 : vector<128x128xf32> to vector<128x128xbf16>
    %cst_33 = arith.constant dense<0.000000e+00> : vector<128x128xf32>
    %59 = tpu.matmul %58, %57, %cst_33 {dimension_numbers = #tpu.dot_dimension_numbers<[1], [0], [0], [1], [0, 0, 1, 1], [], []>} : vector<128x128xbf16>, vector<128x128xbf16>, vector<128x128xf32> -> vector<128x128xf32>
    %c5 = arith.constant 5 : index
    %c0_34 = arith.constant 0 : index
    %60 = vector.load %arg4[%c5, %c0_34] : memref<8x128xf32, #tpu.memory_space<vmem>>, vector<1x128xf32>
    %61 = vector.shape_cast %60 : vector<1x128xf32> to vector<128xf32>
    %62 = vector.shape_cast %61 : vector<128xf32> to vector<1x128xf32>
    %63 = vector.broadcast %62 : vector<1x128xf32> to vector<128x128xf32>
    %64 = arith.addf %59, %63 : vector<128x128xf32>
    %cst_35 = arith.constant 0.000000e+00 : f32
    %65 = vector.broadcast %cst_35 : f32 to vector<128x128xf32>
    %66 = arith.maximumf %64, %65 : vector<128x128xf32>
    %c5_36 = arith.constant 5 : index
    %c0_37 = arith.constant 0 : index
    %c0_38 = arith.constant 0 : index
    %67 = vector.load %arg3[%c5_36, %c0_37, %c0_38] : memref<7x128x128xbf16, #tpu.memory_space<vmem>>, vector<1x128x128xbf16>
    %68 = vector.shape_cast %67 : vector<1x128x128xbf16> to vector<128x128xbf16>
    %69 = arith.truncf %66 : vector<128x128xf32> to vector<128x128xbf16>
    %cst_39 = arith.constant dense<0.000000e+00> : vector<128x128xf32>
    %70 = tpu.matmul %69, %68, %cst_39 {dimension_numbers = #tpu.dot_dimension_numbers<[1], [0], [0], [1], [0, 0, 1, 1], [], []>} : vector<128x128xbf16>, vector<128x128xbf16>, vector<128x128xf32> -> vector<128x128xf32>
    %c6 = arith.constant 6 : index
    %c0_40 = arith.constant 0 : index
    %71 = vector.load %arg4[%c6, %c0_40] : memref<8x128xf32, #tpu.memory_space<vmem>>, vector<1x128xf32>
    %72 = vector.shape_cast %71 : vector<1x128xf32> to vector<128xf32>
    %73 = vector.shape_cast %72 : vector<128xf32> to vector<1x128xf32>
    %74 = vector.broadcast %73 : vector<1x128xf32> to vector<128x128xf32>
    %75 = arith.addf %70, %74 : vector<128x128xf32>
    %cst_41 = arith.constant 0.000000e+00 : f32
    %76 = vector.broadcast %cst_41 : f32 to vector<128x128xf32>
    %77 = arith.maximumf %75, %76 : vector<128x128xf32>
    %c6_42 = arith.constant 6 : index
    %c0_43 = arith.constant 0 : index
    %c0_44 = arith.constant 0 : index
    %78 = vector.load %arg3[%c6_42, %c0_43, %c0_44] : memref<7x128x128xbf16, #tpu.memory_space<vmem>>, vector<1x128x128xbf16>
    %79 = vector.shape_cast %78 : vector<1x128x128xbf16> to vector<128x128xbf16>
    %80 = arith.truncf %77 : vector<128x128xf32> to vector<128x128xbf16>
    %cst_45 = arith.constant dense<0.000000e+00> : vector<128x128xf32>
    %81 = tpu.matmul %80, %79, %cst_45 {dimension_numbers = #tpu.dot_dimension_numbers<[1], [0], [0], [1], [0, 0, 1, 1], [], []>} : vector<128x128xbf16>, vector<128x128xbf16>, vector<128x128xf32> -> vector<128x128xf32>
    %c7 = arith.constant 7 : index
    %c0_46 = arith.constant 0 : index
    %82 = vector.load %arg4[%c7, %c0_46] : memref<8x128xf32, #tpu.memory_space<vmem>>, vector<1x128xf32>
    %83 = vector.shape_cast %82 : vector<1x128xf32> to vector<128xf32>
    %84 = vector.shape_cast %83 : vector<128xf32> to vector<1x128xf32>
    %85 = vector.broadcast %84 : vector<1x128xf32> to vector<128x128xf32>
    %86 = arith.addf %81, %85 : vector<128x128xf32>
    %87 = vector.extract_strided_slice %86 {offsets = [0, 0], sizes = [128, 4], strides = [1, 1]} : vector<128x128xf32> to vector<128x4xf32>
    %c0_47 = arith.constant 0 : index
    %c0_48 = arith.constant 0 : index
    %88 = vector.load %arg5[%c0_47, %c0_48] : memref<128x4xf32, #tpu.memory_space<vmem>>, vector<128x4xf32>
    tpu.vector_store %arg5[%c0_47, %c0_48], %87 {strides = array<i32>} : memref<128x4xf32, #tpu.memory_space<vmem>>, vector<128x4xf32>,
    return
  }
  func.func @transform_0(%arg0: i32) -> (i32, i32) {
    %c0_i32 = arith.constant 0 : i32
    %c0_i32_0 = arith.constant 0 : i32
    return %arg0, %c0_i32 : i32, i32
  }
  func.func @transform_1(%arg0: i32) -> (i32, i32) {
    %c0_i32 = arith.constant 0 : i32
    %c0_i32_0 = arith.constant 0 : i32
    %c0_i32_1 = arith.constant 0 : i32
    return %c0_i32, %c0_i32_0 : i32, i32
  }
  func.func @transform_2(%arg0: i32) -> (i32, i32, i32) {
    %c0_i32 = arith.constant 0 : i32
    %c0_i32_0 = arith.constant 0 : i32
    %c0_i32_1 = arith.constant 0 : i32
    %c0_i32_2 = arith.constant 0 : i32
    return %c0_i32, %c0_i32_0, %c0_i32_1 : i32, i32, i32
  }
  func.func @transform_3(%arg0: i32) -> (i32, i32) {
    %c0_i32 = arith.constant 0 : i32
    %c0_i32_0 = arith.constant 0 : i32
    %c0_i32_1 = arith.constant 0 : i32
    return %c0_i32, %c0_i32_0 : i32, i32
  }
  func.func @transform_4(%arg0: i32) -> (i32, i32) {
    %c0_i32 = arith.constant 0 : i32
    %c0_i32_0 = arith.constant 0 : i32
    return %arg0, %c0_i32 : i32, i32
  }
}

</mosaic_0001>

<llo_original>
// kernel: qnetwork_forward.1
$region0: #{qnetwork_forward.1}
  #allocation0 [shape = 'u32[]', space=smem, size = 0x4, offset = 0x4, fixed_abs, tag = 'smem constant byte address 0x4 - core index']
  #allocation1 [shape = 'u32[144,128]{1,0:T(1,128)}', space=vmem, size = 0x12000, scoped, tag = 'internal scratch']
  %s0 = inlined_call_operand.vmem [shape: f32[256,8], index: 0, kind: input, shape index: {}]
  %s1 = inlined_call_operand.vmem [shape: f32[8,128], index: 1, kind: input, shape index: {}]
  %s2 = inlined_call_operand.vmem [shape: bf16[7,128,128], index: 2, kind: input, shape index: {}]
  %s3 = inlined_call_operand.vmem [shape: f32[8,128], index: 3, kind: input, shape index: {}]
  %s4 = inlined_call_operand.vmem [shape: f32[256,4], index: 4, kind: output, shape index: {}]
  %s5 = sld [smem:[#allocation0]]
  $region49: #{qnetwork_forward.1} parent=0
    _
  %s7 = ssub.s32 1, %s5
  %s8 = scalar_select 0, %s7, %s5
  loop: start=0, step=1, limit=4
  $region2: #{qnetwork_forward.1} parent=0 // loop_pre_header
    _
  $region3: #{qnetwork_forward.1} parent=0 // loop_header
    %s10 = sphi 0, %s14
    %p11 = scmp.ge.s32.totalorder %s10, 4
    %s20 = sphi 0, %s22
    %s23 = sphi 0, %s20
    %s24 = sphi 0, %s23
    %s40 = sphi 0, %s24
    %s44 = sphi 0, %s44
    %s46 = sphi 0, %s44
    %s47 = sphi 0, %s46
    %s61 = sphi 0, %s47
    %s65 = sphi 0, %s65
    %s67 = sphi 0, %s65
    %s68 = sphi 0, %s67
    %s82 = sphi 0, %s68
    %s86 = sphi 0, %s86
    %s88 = sphi 0, %s86
    %s89 = sphi 0, %s88
    %s103 = sphi 0, %s89
    %s109 = sphi 0, %s111
    %s112 = sphi 0, %s109
    %s113 = sphi 0, %s112
    %s129 = sphi 0, %s113
  $region4: #{qnetwork_forward.1} parent=0 // loop_header_branch
    %13 = sbr.rel (%p11) target = $region8
  $region5: #{qnetwork_forward.1} parent=0 // loop_body
    %s15 = ssub.s32 %s10, 1
    %s16 = ssub.s32 %s10, 2
    %s17 = sadd.s32 %s10, 1
    %s18 = ssub.s32 %s10, %s17
    %p19 = scmp.eq.s32.totalorder %s18, 0
    %s21 = sadd.s32 %s20, 1
    %s22 = scalar_select %p19, %s20, %s21
    %p25 = pneg %p19
    %p26 = scmp.eq.s32.totalorder %s10, 1
    %p27 = por %p25, %p26
    %p28 = scmp.ne.s32.totalorder %s20, %s23
    %p29 = scmp.eq.s32.totalorder %s10, 0
    %p30 = por %p28, %p29
    %p31 = scmp.ne.s32.totalorder %s20, %s23
    %p32 = scmp.eq.s32.totalorder %s15, 1
    %p33 = por %p31, %p32
    %p34 = scmp.ne.s32.totalorder %s23, %s24
    %p35 = scmp.eq.s32.totalorder %s15, 0
    %p36 = por %p34, %p35
    %p37 = scmp.ne.s32.totalorder %s23, %s24
    %p38 = scmp.eq.s32.totalorder %s16, 1
    %p39 = por %p37, %p38
    %p41 = scmp.ne.s32.totalorder %s24, %s40
    %p42 = scmp.eq.s32.totalorder %s16, 0
    %p43 = por %p41, %p42
    %s45 = sadd.s32 %s44, 1
    %p48 = scmp.eq.s32.totalorder %s10, 1
    %p49 = scmp.ne.s32.totalorder %s44, %s46
    %p50 = scmp.eq.s32.totalorder %s10, 0
    %p51 = por %p49, %p50
    %p52 = scmp.ne.s32.totalorder %s44, %s46
    %p53 = scmp.eq.s32.totalorder %s15, 1
    %p54 = por %p52, %p53
    %p55 = scmp.ne.s32.totalorder %s46, %s47
    %p56 = scmp.eq.s32.totalorder %s15, 0
    %p57 = por %p55, %p56
    %p58 = scmp.ne.s32.totalorder %s46, %s47
    %p59 = scmp.eq.s32.totalorder %s16, 1
    %p60 = por %p58, %p59
    %p62 = scmp.ne.s32.totalorder %s47, %s61
    %p63 = scmp.eq.s32.totalorder %s16, 0
    %p64 = por %p62, %p63
    %s66 = sadd.s32 %s65, 1
    %p69 = scmp.eq.s32.totalorder %s10, 1
    %p70 = scmp.ne.s32.totalorder %s65, %s67
    %p71 = scmp.eq.s32.totalorder %s10, 0
    %p72 = por %p70, %p71
    %p73 = scmp.ne.s32.totalorder %s65, %s67
    %p74 = scmp.eq.s32.totalorder %s15, 1
    %p75 = por %p73, %p74
    %p76 = scmp.ne.s32.totalorder %s67, %s68
    %p77 = scmp.eq.s32.totalorder %s15, 0
    %p78 = por %p76, %p77
    %p79 = scmp.ne.s32.totalorder %s67, %s68
    %p80 = scmp.eq.s32.totalorder %s16, 1
    %p81 = por %p79, %p80
    %p83 = scmp.ne.s32.totalorder %s68, %s82
    %p84 = scmp.eq.s32.totalorder %s16, 0
    %p85 = por %p83, %p84
    %s87 = sadd.s32 %s86, 1
    %p90 = scmp.eq.s32.totalorder %s10, 1
    %p91 = scmp.ne.s32.totalorder %s86, %s88
    %p92 = scmp.eq.s32.totalorder %s10, 0
    %p93 = por %p91, %p92
    %p94 = scmp.ne.s32.totalorder %s86, %s88
    %p95 = scmp.eq.s32.totalorder %s15, 1
    %p96 = por %p94, %p95
    %p97 = scmp.ne.s32.totalorder %s88, %s89
    %p98 = scmp.eq.s32.totalorder %s15, 0
    %p99 = por %p97, %p98
    %p100 = scmp.ne.s32.totalorder %s88, %s89
    %p101 = scmp.eq.s32.totalorder %s16, 1
    %p102 = por %p100, %p101
    %p104 = scmp.ne.s32.totalorder %s89, %s103
    %p105 = scmp.eq.s32.totalorder %s16, 0
    %p106 = por %p104, %p105
    %s107 = ssub.s32 %s10, %s17
    %p108 = scmp.eq.s32.totalorder %s107, 0
    %s110 = sadd.s32 %s109, 1
    %s111 = scalar_select %p108, %s109, %s110
    %p114 = pneg %p108
    %p115 = scmp.eq.s32.totalorder %s10, 1
    %p116 = por %p114, %p115
    %p117 = scmp.ne.s32.totalorder %s109, %s112
    %p118 = scmp.eq.s32.totalorder %s10, 0
    %p119 = por %p117, %p118
    %p120 = scmp.ne.s32.totalorder %s109, %s112
    %p121 = scmp.eq.s32.totalorder %s15, 1
    %p122 = por %p120, %p121
    %p123 = scmp.ne.s32.totalorder %s112, %s113
    %p124 = scmp.eq.s32.totalorder %s15, 0
    %p125 = por %p123, %p124
    %p126 = scmp.ne.s32.totalorder %s112, %s113
    %p127 = scmp.eq.s32.totalorder %s16, 1
    %p128 = por %p126, %p127
    %p130 = scmp.ne.s32.totalorder %s113, %s129
    %p131 = scmp.eq.s32.totalorder %s16, 0
    %p132 = por %p130, %p131
    %p133 = scmp.le.s32.totalorder 1, %s10
    %p134 = scmp.lt.s32.totalorder %s10, 3
    %p135 = pnand %p133, %p134
    %p136 = pneg %p135
    // Predicated region
    $region9: #{qnetwork_forward.1} parent=5 // pred_check
      _
    $region10: #{qnetwork_forward.1} parent=5 // pred_check_branch
      %138 = sbr.rel (%p135) target = $region12
    $region11: #{qnetwork_forward.1} parent=5 // pred_region
      %s139 = ssub.s32 %s10, 1
      // Predicated region
      $region13: #{qnetwork_forward.1} parent=11 // pred_check
        %p140 = pneg %p57
      $region14: #{qnetwork_forward.1} parent=11 // pred_check_branch
        %142 = sbr.rel (%p140) target = $region16
      $region15: #{qnetwork_forward.1} parent=11 // pred_region
        _
      $region16: #{qnetwork_forward.1} parent=11 // pred_fallthru
        _
      // Predicated region
      $region17: #{qnetwork_forward.1} parent=11 // pred_check
        %p143 = pneg %p78
      $region18: #{qnetwork_forward.1} parent=11 // pred_check_branch
        %145 = sbr.rel (%p143) target = $region20
      $region19: #{qnetwork_forward.1} parent=11 // pred_region
        _
      $region20: #{qnetwork_forward.1} parent=11 // pred_fallthru
        _
      // Predicated region
      $region21: #{qnetwork_forward.1} parent=11 // pred_check
        %p146 = pneg %p99
      $region22: #{qnetwork_forward.1} parent=11 // pred_check_branch
        %148 = sbr.rel (%p146) target = $region24
      $region23: #{qnetwork_forward.1} parent=11 // pred_region
        _
      $region24: #{qnetwork_forward.1} parent=11 // pred_fallthru
        _
    $region12: #{qnetwork_forward.1} parent=5 // pred_fallthru
      _
    %p149 = scmp.lt.s32.totalorder %s10, 2
    // Predicated region
    $region25: #{qnetwork_forward.1} parent=5 // pred_check
      %p150 = pneg %p149
    $region26: #{qnetwork_forward.1} parent=5 // pred_check_branch
      %152 = sbr.rel (%p150) target = $region28
    $region27: #{qnetwork_forward.1} parent=5 // pred_region
      // Predicated region
      $region29: #{qnetwork_forward.1} parent=27 // pred_check
        %p153 = pneg %p30
      $region30: #{qnetwork_forward.1} parent=27 // pred_check_branch
        %155 = sbr.rel (%p153) target = $region32
      $region31: #{qnetwork_forward.1} parent=27 // pred_region
        %s156 = smul.u32 16, %s10
        %p157 = scmp.lt.s32.totalorder %s156, 31
        %s158 = scalar_select %p157, %s156, 31
        %s159 = smul.addr %s158, 8
        %s160 = scalar_lea.vmem %s0, %s159
        %s161 = smul.u32 16, %s10
      $region32: #{qnetwork_forward.1} parent=27 // pred_fallthru
        _
    $region28: #{qnetwork_forward.1} parent=5 // pred_fallthru
      _
    %p162 = scmp.le.s32.totalorder 1, %s10
    %p163 = scmp.lt.s32.totalorder %s10, 3
    %p164 = pnand %p162, %p163
    %p165 = pneg %p164
    // Predicated region
    $region33: #{qnetwork_forward.1} parent=5 // pred_check
      _
    $region34: #{qnetwork_forward.1} parent=5 // pred_check_branch
      %167 = sbr.rel (%p164) target = $region36
    $region35: #{qnetwork_forward.1} parent=5 // pred_region
      %s168 = ssub.s32 %s10, 1
      %s169 = smul.u32 16, %s15
      %p170 = scmp.lt.s32.totalorder %s169, 31
      %s171 = scalar_select %p170, %s169, 31
      %s172 = smul.addr %s171, 8
      %s173 = scalar_lea.vmem %s0, %s172
      %p174 = pneg %p36
      %p175 = pneg %p33
      %p176 = pneg %p57
      %p177 = pneg %p54
      %p178 = pneg %p78
      %p179 = pneg %p75
      %p180 = pneg %p99
      %p181 = pneg %p96
      %p182 = pneg %p125
      %p183 = pneg %p122
      %s184 = smul.u32 16, %s15
      %p185 = scmp.lt.s32.totalorder %s184, 31
      %s186 = scalar_select %p185, %s184, 31
      %s187 = smul.addr %s186, 8
      %s188 = scalar_lea.vmem %s4, %s187
      %s189 = smul.u32 16, %s15
      %p190 = scmp.lt.s32.totalorder %s189, 31
      %s191 = scalar_select %p190, %s189, 31
      %s192 = smul.addr %s191, 8
      %s193 = scalar_lea.vmem %s0, %s192
      %s194 = smul.u32 16, %s15
      %s195 = smul.u32 16, %s15
      %p196 = scmp.lt.s32.totalorder %s195, 31
      %s197 = scalar_select %p196, %s195, 31
      %s198 = smul.addr %s197, 8
      %s199 = scalar_lea.vmem %s4, %s198
      %s200 = smul.u32 16, %s15
      %v202 = vld [vmem:[%s193] sm:$0xff]
      %v203 = vld [vmem:[%s193 + $0x8] sm:$0xff]
      %v204 = vld [vmem:[%s193 + $0x10] sm:$0xff]
      %v205 = vld [vmem:[%s193 + $0x18] sm:$0xff]
      %v206 = vld [vmem:[%s193 + $0x20] sm:$0xff]
      %v207 = vld [vmem:[%s193 + $0x28] sm:$0xff]
      %v208 = vld [vmem:[%s193 + $0x30] sm:$0xff]
      %v209 = vld [vmem:[%s193 + $0x38] sm:$0xff]
      %v210 = vld [vmem:[%s193 + $0x40] sm:$0xff]
      %v211 = vld [vmem:[%s193 + $0x48] sm:$0xff]
      %v212 = vld [vmem:[%s193 + $0x50] sm:$0xff]
      %v213 = vld [vmem:[%s193 + $0x58] sm:$0xff]
      %v214 = vld [vmem:[%s193 + $0x60] sm:$0xff]
      %v215 = vld [vmem:[%s193 + $0x68] sm:$0xff]
      %v216 = vld [vmem:[%s193 + $0x70] sm:$0xff]
      %v217 = vld [vmem:[%s193 + $0x78] sm:$0xff]
      %v218 = vld [vmem:[%s1] sm:$0xff]
      %v219 = vpack.c.bf16 %v218, %v218
      %v220 = vpack.c.bf16 %v203, %v202
      %v221 = vpack.c.bf16 %v205, %v204
      %v222 = vpack.c.bf16 %v207, %v206
      %v223 = vpack.c.bf16 %v209, %v208
      %v224 = vpack.c.bf16 %v211, %v210
      %v225 = vpack.c.bf16 %v213, %v212
      %v226 = vpack.c.bf16 %v215, %v214
      %v227 = vpack.c.bf16 %v217, %v216
      %v228 = vld [vmem:[%s3] sm:$0x1]
      %v229 = vlaneseq
      %v230 = vshrl.u32 %v229, 7
      %v231 = vsub.s32 0, %v230
      %v232 = vrot.slane %v228, %v231
      %vm233 = vcmask 64512
      %v235 = vsel %vm233, %v220, 0
      %v238 = vsel %vm233, %v221, 0
      %v241 = vsel %vm233, %v222, 0
      %v244 = vsel %vm233, %v223, 0
      %v247 = vsel %vm233, %v224, 0
      %v250 = vsel %vm233, %v225, 0
      %v253 = vsel %vm233, %v226, 0
      %v256 = vsel %vm233, %v227, 0
      %vm258 = vcmask 1043456
      %v260 = vsel %vm258, %v219, 0
      %262 = vmatprep.subr.bf16.mxu0 0
      %263 = vmatpush1.bf16.msra.mxu0 %v260
      %264 = vmatprep.subr.bf16.mxu0 0
      %265 = vmatpush1.bf16.msra.mxu0 0
      %266 = vmatprep.subr.bf16.mxu0 0
      %267 = vmatpush1.bf16.msra.mxu0 0
      %268 = vmatprep.subr.bf16.mxu0 0
      %269 = vmatpush1.bf16.msra.mxu0 0
      %270 = vmatprep.subr.bf16.mxu0 0
      %271 = vmatpush1.bf16.msra.mxu0 0
      %272 = vmatprep.subr.bf16.mxu0 0
      %273 = vmatpush1.bf16.msra.mxu0 0
      %274 = vmatprep.subr.bf16.mxu0 0
      %275 = vmatpush1.bf16.msra.mxu0 0
      %276 = vmatprep.subr.bf16.mxu0 0
      %277 = vmatpush1.bf16.msra.mxu0 0
      %278 = vmatprep.subr.bf16.mxu0 0
      %279 = vmatpush1.bf16.msra.mxu0 0
      %280 = vmatprep.subr.bf16.mxu0 0
      %281 = vmatpush1.bf16.msra.mxu0 0
      %282 = vmatprep.subr.bf16.mxu0 0
      %283 = vmatpush1.bf16.msra.mxu0 0
      %284 = vmatprep.subr.bf16.mxu0 0
      %285 = vmatpush1.bf16.msra.mxu0 0
      %286 = vmatprep.subr.bf16.mxu0 0
      %287 = vmatpush1.bf16.msra.mxu0 0
      %288 = vmatprep.subr.bf16.mxu0 0
      %289 = vmatpush1.bf16.msra.mxu0 0
      %290 = vmatprep.subr.bf16.mxu0 0
      %291 = vmatpush1.bf16.msra.mxu0 0
      %292 = vmatprep.subr.bf16.mxu0 0
      %293 = vmatpush1.bf16.msra.mxu0 0
      %294 = vmatprep.mubr.bf16.mxu0 0
      %295 = vmatmul.mubr.bf16.gmra.mrb[0].mxu0 %v235
      %v296 = vpop.f32.mrb[0].mxu0
      %v297 = vadd.f32 %v232, %v296
      %v298 = vpop.f32.mrb[0].mxu0
      %v299 = vpop.f32.mrb[0].mxu0
      %v300 = vadd.f32 %v232, %v299
      %v301 = vpop.f32.mrb[0].mxu0
      %302 = vmatprep.mubr.bf16.mxu0 0
      %303 = vmatmul.mubr.bf16.gmra.mrb[0].mxu0 %v238
      %v304 = vpop.f32.mrb[0].mxu0
      %v305 = vadd.f32 %v232, %v304
      %v306 = vpop.f32.mrb[0].mxu0
      %v307 = vpop.f32.mrb[0].mxu0
      %v308 = vadd.f32 %v232, %v307
      %v309 = vpop.f32.mrb[0].mxu0
      %310 = vmatprep.mubr.bf16.mxu0 0
      %311 = vmatmul.mubr.bf16.gmra.mrb[0].mxu0 %v241
      %v312 = vpop.f32.mrb[0].mxu0
      %v313 = vadd.f32 %v232, %v312
      %v314 = vpop.f32.mrb[0].mxu0
      %v315 = vpop.f32.mrb[0].mxu0
      %v316 = vadd.f32 %v232, %v315
      %v317 = vpop.f32.mrb[0].mxu0
      %318 = vmatprep.mubr.bf16.mxu0 0
      %319 = vmatmul.mubr.bf16.gmra.mrb[0].mxu0 %v244
      %v320 = vpop.f32.mrb[0].mxu0
      %v321 = vadd.f32 %v232, %v320
      %v322 = vpop.f32.mrb[0].mxu0
      %v323 = vpop.f32.mrb[0].mxu0
      %v324 = vadd.f32 %v232, %v323
      %v325 = vpop.f32.mrb[0].mxu0
      %326 = vmatprep.mubr.bf16.mxu0 0
      %327 = vmatmul.mubr.bf16.gmra.mrb[0].mxu0 %v247
      %v328 = vpop.f32.mrb[0].mxu0
      %v329 = vadd.f32 %v232, %v328
      %v330 = vpop.f32.mrb[0].mxu0
      %v331 = vpop.f32.mrb[0].mxu0
      %v332 = vadd.f32 %v232, %v331
      %v333 = vpop.f32.mrb[0].mxu0
      %334 = vmatprep.mubr.bf16.mxu0 0
      %335 = vmatmul.mubr.bf16.gmra.mrb[0].mxu0 %v250
      %v336 = vpop.f32.mrb[0].mxu0
      %v337 = vadd.f32 %v232, %v336
      %v338 = vpop.f32.mrb[0].mxu0
      %v339 = vpop.f32.mrb[0].mxu0
      %v340 = vadd.f32 %v232, %v339
      %v341 = vpop.f32.mrb[0].mxu0
      %342 = vmatprep.mubr.bf16.mxu0 0
      %343 = vmatmul.mubr.bf16.gmra.mrb[0].mxu0 %v253
      %v344 = vpop.f32.mrb[0].mxu0
      %v345 = vadd.f32 %v232, %v344
      %v346 = vpop.f32.mrb[0].mxu0
      %v347 = vpop.f32.mrb[0].mxu0
      %v348 = vadd.f32 %v232, %v347
      %v349 = vpop.f32.mrb[0].mxu0
      %350 = vmatprep.mubr.bf16.mxu0 0
      %351 = vmatmul.mubr.bf16.gmra.mrb[0].mxu0 %v256
      %v352 = vpop.f32.mrb[0].mxu0
      %v353 = vadd.f32 %v232, %v352
      %v354 = vpop.f32.mrb[0].mxu0
      %v355 = vpop.f32.mrb[0].mxu0
      %v356 = vadd.f32 %v232, %v355
      %v357 = vpop.f32.mrb[0].mxu0
      %358 = vdwg.mxu0
      %v359 = vmax.f32 %v297, 0.0
      %v360 = vmax.f32 %v300, 0.0
      %v361 = vmax.f32 %v305, 0.0
      %v362 = vmax.f32 %v308, 0.0
      %v363 = vmax.f32 %v313, 0.0
      %v364 = vmax.f32 %v316, 0.0
      %v365 = vmax.f32 %v321, 0.0
      %v366 = vmax.f32 %v324, 0.0
      %v367 = vmax.f32 %v329, 0.0
      %v368 = vmax.f32 %v332, 0.0
      %v369 = vmax.f32 %v337, 0.0
      %v370 = vmax.f32 %v340, 0.0
      %v371 = vmax.f32 %v345, 0.0
      %v372 = vmax.f32 %v348, 0.0
      %v373 = vmax.f32 %v353, 0.0
      %v374 = vmax.f32 %v356, 0.0
      %v375 = vld [vmem:[%s2] sm:$0xf]
      %v376 = vld [vmem:[%s2 + $0x4] sm:$0xf]
      %v377 = vld [vmem:[%s2 + $0x8] sm:$0xf]
      %v378 = vld [vmem:[%s2 + $0xc] sm:$0xf]
      %v379 = vld [vmem:[%s2 + $0x10] sm:$0xf]
      %v380 = vld [vmem:[%s2 + $0x14] sm:$0xf]
      %v381 = vld [vmem:[%s2 + $0x18] sm:$0xf]
      %v382 = vld [vmem:[%s2 + $0x1c] sm:$0xf]
      %v383 = vld [vmem:[%s2 + $0x20] sm:$0xf]
      %v384 = vld [vmem:[%s2 + $0x24] sm:$0xf]
      %v385 = vld [vmem:[%s2 + $0x28] sm:$0xf]
      %v386 = vld [vmem:[%s2 + $0x2c] sm:$0xf]
      %v387 = vld [vmem:[%s2 + $0x30] sm:$0xf]
      %v388 = vld [vmem:[%s2 + $0x34] sm:$0xf]
      %v389 = vld [vmem:[%s2 + $0x38] sm:$0xf]
      %v390 = vld [vmem:[%s2 + $0x3c] sm:$0xf]
      %v391 = vpack.c.bf16 %v360, %v359
      %v392 = vpack.c.bf16 %v362, %v361
      %v393 = vpack.c.bf16 %v364, %v363
      %v394 = vpack.c.bf16 %v366, %v365
      %v395 = vpack.c.bf16 %v368, %v367
      %v396 = vpack.c.bf16 %v370, %v369
      %v397 = vpack.c.bf16 %v372, %v371
      %v398 = vpack.c.bf16 %v374, %v373
      %v399 = vld [vmem:[%s3 + $0x1] sm:$0x1]
      %v400 = vlaneseq
      %v401 = vshrl.u32 %v400, 7
      %v402 = vsub.s32 0, %v401
      %v403 = vrot.slane %v399, %v402
      %v420 = vunpack.c.l.b16 %v375
      %v421 = vunpack.c.l.b16 %v376
      %v422 = vunpack.c.l.b16 %v377
      %v423 = vunpack.c.l.b16 %v378
      %v424 = vunpack.c.l.b16 %v379
      %v425 = vunpack.c.l.b16 %v380
      %v426 = vunpack.c.l.b16 %v381
      %v427 = vunpack.c.l.b16 %v382
      %v428 = vunpack.c.l.b16 %v383
      %v429 = vunpack.c.l.b16 %v384
      %v430 = vunpack.c.l.b16 %v385
      %v431 = vunpack.c.l.b16 %v386
      %v432 = vunpack.c.l.b16 %v387
      %v433 = vunpack.c.l.b16 %v388
      %v434 = vunpack.c.l.b16 %v389
      %v435 = vunpack.c.l.b16 %v390
      %v436 = vpack.c.b16 %v421, %v420
      %v437 = vpack.c.b16 %v423, %v422
      %v438 = vpack.c.b16 %v425, %v424
      %v439 = vpack.c.b16 %v427, %v426
      %v440 = vpack.c.b16 %v429, %v428
      %v441 = vpack.c.b16 %v431, %v430
      %v442 = vpack.c.b16 %v433, %v432
      %v443 = vpack.c.b16 %v435, %v434
      %452 = vmatprep.subr.bf16.mxu0 0
      %453 = vmatpush1.bf16.msra.mxu0 %v436
      %454 = vmatprep.subr.bf16.mxu0 0
      %455 = vmatpush1.bf16.msra.mxu0 %v437
      %456 = vmatprep.subr.bf16.mxu0 0
      %457 = vmatpush1.bf16.msra.mxu0 %v438
      %458 = vmatprep.subr.bf16.mxu0 0
      %459 = vmatpush1.bf16.msra.mxu0 %v439
      %460 = vmatprep.subr.bf16.mxu0 0
      %461 = vmatpush1.bf16.msra.mxu0 %v440
      %462 = vmatprep.subr.bf16.mxu0 0
      %463 = vmatpush1.bf16.msra.mxu0 %v441
      %464 = vmatprep.subr.bf16.mxu0 0
      %465 = vmatpush1.bf16.msra.mxu0 %v442
      %466 = vmatprep.subr.bf16.mxu0 0
      %467 = vmatpush1.bf16.msra.mxu0 %v443
      %468 = vmatprep.subr.bf16.mxu0 0
      %469 = vmatpush1.bf16.msra.mxu0 0
      %470 = vmatprep.subr.bf16.mxu0 0
      %471 = vmatpush1.bf16.msra.mxu0 0
      %472 = vmatprep.subr.bf16.mxu0 0
      %473 = vmatpush1.bf16.msra.mxu0 0
      %474 = vmatprep.subr.bf16.mxu0 0
      %475 = vmatpush1.bf16.msra.mxu0 0
      %476 = vmatprep.subr.bf16.mxu0 0
      %477 = vmatpush1.bf16.msra.mxu0 0
      %478 = vmatprep.subr.bf16.mxu0 0
      %479 = vmatpush1.bf16.msra.mxu0 0
      %480 = vmatprep.subr.bf16.mxu0 0
      %481 = vmatpush1.bf16.msra.mxu0 0
      %482 = vmatprep.subr.bf16.mxu0 0
      %483 = vmatpush1.bf16.msra.mxu0 0
      %484 = vmatprep.mubr.bf16.mxu0 0
      %485 = vmatmul.mubr.bf16.gmra.mrb[0].mxu0 %v391
      %v486 = vpop.f32.mrb[0].mxu0
      %v487 = vadd.f32 %v403, %v486
      %v488 = vpop.f32.mrb[0].mxu0
      %v489 = vpop.f32.mrb[0].mxu0
      %v490 = vadd.f32 %v403, %v489
      %v491 = vpop.f32.mrb[0].mxu0
      %492 = vmatprep.mubr.bf16.mxu0 0
      %493 = vmatmul.mubr.bf16.gmra.mrb[0].mxu0 %v392
      %v494 = vpop.f32.mrb[0].mxu0
      %v495 = vadd.f32 %v403, %v494
      %v496 = vpop.f32.mrb[0].mxu0
      %v497 = vpop.f32.mrb[0].mxu0
      %v498 = vadd.f32 %v403, %v497
      %v499 = vpop.f32.mrb[0].mxu0
      %500 = vmatprep.mubr.bf16.mxu0 0
      %501 = vmatmul.mubr.bf16.gmra.mrb[0].mxu0 %v393
      %v502 = vpop.f32.mrb[0].mxu0
      %v503 = vadd.f32 %v403, %v502
      %v504 = vpop.f32.mrb[0].mxu0
      %v505 = vpop.f32.mrb[0].mxu0
      %v506 = vadd.f32 %v403, %v505
      %v507 = vpop.f32.mrb[0].mxu0
      %508 = vmatprep.mubr.bf16.mxu0 0
      %509 = vmatmul.mubr.bf16.gmra.mrb[0].mxu0 %v394
      %v510 = vpop.f32.mrb[0].mxu0
      %v511 = vadd.f32 %v403, %v510
      %v512 = vpop.f32.mrb[0].mxu0
      %v513 = vpop.f32.mrb[0].mxu0
      %v514 = vadd.f32 %v403, %v513
      %v515 = vpop.f32.mrb[0].mxu0
      %516 = vmatprep.mubr.bf16.mxu0 0
      %517 = vmatmul.mubr.bf16.gmra.mrb[0].mxu0 %v395
      %v518 = vpop.f32.mrb[0].mxu0
      %v519 = vadd.f32 %v403, %v518
      %v520 = vpop.f32.mrb[0].mxu0
      %v521 = vpop.f32.mrb[0].mxu0
      %v522 = vadd.f32 %v403, %v521
      %v523 = vpop.f32.mrb[0].mxu0
      %524 = vmatprep.mubr.bf16.mxu0 0
      %525 = vmatmul.mubr.bf16.gmra.mrb[0].mxu0 %v396
      %v526 = vpop.f32.mrb[0].mxu0
      %v527 = vadd.f32 %v403, %v526
      %v528 = vpop.f32.mrb[0].mxu0
      %v529 = vpop.f32.mrb[0].mxu0
      %v530 = vadd.f32 %v403, %v529
      %v531 = vpop.f32.mrb[0].mxu0
      %532 = vmatprep.mubr.bf16.mxu0 0
      %533 = vmatmul.mubr.bf16.gmra.mrb[0].mxu0 %v397
      %v534 = vpop.f32.mrb[0].mxu0
      %v535 = vadd.f32 %v403, %v534
      %v536 = vpop.f32.mrb[0].mxu0
      %v537 = vpop.f32.mrb[0].mxu0
      %v538 = vadd.f32 %v403, %v537
      %v539 = vpop.f32.mrb[0].mxu0
      %540 = vmatprep.mubr.bf16.mxu0 0
      %541 = vmatmul.mubr.bf16.gmra.mrb[0].mxu0 %v398
      %v542 = vpop.f32.mrb[0].mxu0
      %v543 = vadd.f32 %v403, %v542
      %v544 = vpop.f32.mrb[0].mxu0
      %v545 = vpop.f32.mrb[0].mxu0
      %v546 = vadd.f32 %v403, %v545
      %v547 = vpop.f32.mrb[0].mxu0
      %548 = vdwg.mxu0
      %v549 = vmax.f32 %v487, 0.0
      %v550 = vmax.f32 %v490, 0.0
      %v551 = vmax.f32 %v495, 0.0
      %v552 = vmax.f32 %v498, 0.0
      %v553 = vmax.f32 %v503, 0.0
      %v554 = vmax.f32 %v506, 0.0
      %v555 = vmax.f32 %v511, 0.0
      %v556 = vmax.f32 %v514, 0.0
      %v557 = vmax.f32 %v519, 0.0
      %v558 = vmax.f32 %v522, 0.0
      %v559 = vmax.f32 %v527, 0.0
      %v560 = vmax.f32 %v530, 0.0
      %v561 = vmax.f32 %v535, 0.0
      %v562 = vmax.f32 %v538, 0.0
      %v563 = vmax.f32 %v543, 0.0
      %v564 = vmax.f32 %v546, 0.0
      %s565 = scalar_lea.vmem %s2, 64
      %v566 = vld [vmem:[%s565] sm:$0xf]
      %v567 = vld [vmem:[%s565 + $0x4] sm:$0xf]
      %v568 = vld [vmem:[%s565 + $0x8] sm:$0xf]
      %v569 = vld [vmem:[%s565 + $0xc] sm:$0xf]
      %v570 = vld [vmem:[%s565 + $0x10] sm:$0xf]
      %v571 = vld [vmem:[%s565 + $0x14] sm:$0xf]
      %v572 = vld [vmem:[%s565 + $0x18] sm:$0xf]
      %v573 = vld [vmem:[%s565 + $0x1c] sm:$0xf]
      %v574 = vld [vmem:[%s565 + $0x20] sm:$0xf]
      %v575 = vld [vmem:[%s565 + $0x24] sm:$0xf]
      %v576 = vld [vmem:[%s565 + $0x28] sm:$0xf]
      %v577 = vld [vmem:[%s565 + $0x2c] sm:$0xf]
      %v578 = vld [vmem:[%s565 + $0x30] sm:$0xf]
      %v579 = vld [vmem:[%s565 + $0x34] sm:$0xf]
      %v580 = vld [vmem:[%s565 + $0x38] sm:$0xf]
      %v581 = vld [vmem:[%s565 + $0x3c] sm:$0xf]
      %v582 = vpack.c.bf16 %v550, %v549
      %v583 = vpack.c.bf16 %v552, %v551
      %v584 = vpack.c.bf16 %v554, %v553
      %v585 = vpack.c.bf16 %v556, %v555
      %v586 = vpack.c.bf16 %v558, %v557
      %v587 = vpack.c.bf16 %v560, %v559
      %v588 = vpack.c.bf16 %v562, %v561
      %v589 = vpack.c.bf16 %v564, %v563
      %v590 = vld [vmem:[%s3 + $0x2] sm:$0x1]
      %v591 = vlaneseq
      %v592 = vshrl.u32 %v591, 7
      %v593 = vsub.s32 0, %v592
      %v594 = vrot.slane %v590, %v593
      %v611 = vunpack.c.l.b16 %v566
      %v612 = vunpack.c.l.b16 %v567
      %v613 = vunpack.c.l.b16 %v568
      %v614 = vunpack.c.l.b16 %v569
      %v615 = vunpack.c.l.b16 %v570
      %v616 = vunpack.c.l.b16 %v571
      %v617 = vunpack.c.l.b16 %v572
      %v618 = vunpack.c.l.b16 %v573
      %v619 = vunpack.c.l.b16 %v574
      %v620 = vunpack.c.l.b16 %v575
      %v621 = vunpack.c.l.b16 %v576
      %v622 = vunpack.c.l.b16 %v577
      %v623 = vunpack.c.l.b16 %v578
      %v624 = vunpack.c.l.b16 %v579
      %v625 = vunpack.c.l.b16 %v580
      %v626 = vunpack.c.l.b16 %v581
      %v627 = vpack.c.b16 %v612, %v611
      %v628 = vpack.c.b16 %v614, %v613
      %v629 = vpack.c.b16 %v616, %v615
      %v630 = vpack.c.b16 %v618, %v617
      %v631 = vpack.c.b16 %v620, %v619
      %v632 = vpack.c.b16 %v622, %v621
      %v633 = vpack.c.b16 %v624, %v623
      %v634 = vpack.c.b16 %v626, %v625
      %643 = vmatprep.subr.bf16.mxu0 0
      %644 = vmatpush1.bf16.msra.mxu0 %v627
      %645 = vmatprep.subr.bf16.mxu0 0
      %646 = vmatpush1.bf16.msra.mxu0 %v628
      %647 = vmatprep.subr.bf16.mxu0 0
      %648 = vmatpush1.bf16.msra.mxu0 %v629
      %649 = vmatprep.subr.bf16.mxu0 0
      %650 = vmatpush1.bf16.msra.mxu0 %v630
      %651 = vmatprep.subr.bf16.mxu0 0
      %652 = vmatpush1.bf16.msra.mxu0 %v631
      %653 = vmatprep.subr.bf16.mxu0 0
      %654 = vmatpush1.bf16.msra.mxu0 %v632
      %655 = vmatprep.subr.bf16.mxu0 0
      %656 = vmatpush1.bf16.msra.mxu0 %v633
      %657 = vmatprep.subr.bf16.mxu0 0
      %658 = vmatpush1.bf16.msra.mxu0 %v634
      %659 = vmatprep.subr.bf16.mxu0 0
      %660 = vmatpush1.bf16.msra.mxu0 0
      %661 = vmatprep.subr.bf16.mxu0 0
      %662 = vmatpush1.bf16.msra.mxu0 0
      %663 = vmatprep.subr.bf16.mxu0 0
      %664 = vmatpush1.bf16.msra.mxu0 0
      %665 = vmatprep.subr.bf16.mxu0 0
      %666 = vmatpush1.bf16.msra.mxu0 0
      %667 = vmatprep.subr.bf16.mxu0 0
      %668 = vmatpush1.bf16.msra.mxu0 0
      %669 = vmatprep.subr.bf16.mxu0 0
      %670 = vmatpush1.bf16.msra.mxu0 0
      %671 = vmatprep.subr.bf16.mxu0 0
      %672 = vmatpush1.bf16.msra.mxu0 0
      %673 = vmatprep.subr.bf16.mxu0 0
      %674 = vmatpush1.bf16.msra.mxu0 0
      %675 = vmatprep.mubr.bf16.mxu0 0
      %676 = vmatmul.mubr.bf16.gmra.mrb[0].mxu0 %v582
      %v677 = vpop.f32.mrb[0].mxu0
      %v678 = vadd.f32 %v594, %v677
      %v679 = vpop.f32.mrb[0].mxu0
      %v680 = vpop.f32.mrb[0].mxu0
      %v681 = vadd.f32 %v594, %v680
      %v682 = vpop.f32.mrb[0].mxu0
      %683 = vmatprep.mubr.bf16.mxu0 0
      %684 = vmatmul.mubr.bf16.gmra.mrb[0].mxu0 %v583
      %v685 = vpop.f32.mrb[0].mxu0
      %v686 = vadd.f32 %v594, %v685
      %v687 = vpop.f32.mrb[0].mxu0
      %v688 = vpop.f32.mrb[0].mxu0
      %v689 = vadd.f32 %v594, %v688
      %v690 = vpop.f32.mrb[0].mxu0
      %691 = vmatprep.mubr.bf16.mxu0 0
      %692 = vmatmul.mubr.bf16.gmra.mrb[0].mxu0 %v584
      %v693 = vpop.f32.mrb[0].mxu0
      %v694 = vadd.f32 %v594, %v693
      %v695 = vpop.f32.mrb[0].mxu0
      %v696 = vpop.f32.mrb[0].mxu0
      %v697 = vadd.f32 %v594, %v696
      %v698 = vpop.f32.mrb[0].mxu0
      %699 = vmatprep.mubr.bf16.mxu0 0
      %700 = vmatmul.mubr.bf16.gmra.mrb[0].mxu0 %v585
      %v701 = vpop.f32.mrb[0].mxu0
      %v702 = vadd.f32 %v594, %v701
      %v703 = vpop.f32.mrb[0].mxu0
      %v704 = vpop.f32.mrb[0].mxu0
      %v705 = vadd.f32 %v594, %v704
      %v706 = vpop.f32.mrb[0].mxu0
      %707 = vmatprep.mubr.bf16.mxu0 0
      %708 = vmatmul.mubr.bf16.gmra.mrb[0].mxu0 %v586
      %v709 = vpop.f32.mrb[0].mxu0
      %v710 = vadd.f32 %v594, %v709
      %v711 = vpop.f32.mrb[0].mxu0
      %v712 = vpop.f32.mrb[0].mxu0
      %v713 = vadd.f32 %v594, %v712
      %v714 = vpop.f32.mrb[0].mxu0
      %715 = vmatprep.mubr.bf16.mxu0 0
      %716 = vmatmul.mubr.bf16.gmra.mrb[0].mxu0 %v587
      %v717 = vpop.f32.mrb[0].mxu0
      %v718 = vadd.f32 %v594, %v717
      %v719 = vpop.f32.mrb[0].mxu0
      %v720 = vpop.f32.mrb[0].mxu0
      %v721 = vadd.f32 %v594, %v720
      %v722 = vpop.f32.mrb[0].mxu0
      %723 = vmatprep.mubr.bf16.mxu0 0
      %724 = vmatmul.mubr.bf16.gmra.mrb[0].mxu0 %v588
      %v725 = vpop.f32.mrb[0].mxu0
      %v726 = vadd.f32 %v594, %v725
      %v727 = vpop.f32.mrb[0].mxu0
      %v728 = vpop.f32.mrb[0].mxu0
      %v729 = vadd.f32 %v594, %v728
      %v730 = vpop.f32.mrb[0].mxu0
      %731 = vmatprep.mubr.bf16.mxu0 0
      %732 = vmatmul.mubr.bf16.gmra.mrb[0].mxu0 %v589
      %v733 = vpop.f32.mrb[0].mxu0
      %v734 = vadd.f32 %v594, %v733
      %v735 = vpop.f32.mrb[0].mxu0
      %v736 = vpop.f32.mrb[0].mxu0
      %v737 = vadd.f32 %v594, %v736
      %v738 = vpop.f32.mrb[0].mxu0
      %739 = vdwg.mxu0
      %v740 = vmax.f32 %v678, 0.0
      %v741 = vmax.f32 %v681, 0.0
      %v742 = vmax.f32 %v686, 0.0
      %v743 = vmax.f32 %v689, 0.0
      %v744 = vmax.f32 %v694, 0.0
      %v745 = vmax.f32 %v697, 0.0
      %v746 = vmax.f32 %v702, 0.0
      %v747 = vmax.f32 %v705, 0.0
      %v748 = vmax.f32 %v710, 0.0
      %v749 = vmax.f32 %v713, 0.0
      %v750 = vmax.f32 %v718, 0.0
      %v751 = vmax.f32 %v721, 0.0
      %v752 = vmax.f32 %v726, 0.0
      %v753 = vmax.f32 %v729, 0.0
      %v754 = vmax.f32 %v734, 0.0
      %v755 = vmax.f32 %v737, 0.0
      %s756 = scalar_lea.vmem %s2, 128
      %v757 = vld [vmem:[%s756] sm:$0xf]
      %v758 = vld [vmem:[%s756 + $0x4] sm:$0xf]
      %v759 = vld [vmem:[%s756 + $0x8] sm:$0xf]
      %v760 = vld [vmem:[%s756 + $0xc] sm:$0xf]
      %v761 = vld [vmem:[%s756 + $0x10] sm:$0xf]
      %v762 = vld [vmem:[%s756 + $0x14] sm:$0xf]
      %v763 = vld [vmem:[%s756 + $0x18] sm:$0xf]
      %v764 = vld [vmem:[%s756 + $0x1c] sm:$0xf]
      %v765 = vld [vmem:[%s756 + $0x20] sm:$0xf]
      %v766 = vld [vmem:[%s756 + $0x24] sm:$0xf]
      %v767 = vld [vmem:[%s756 + $0x28] sm:$0xf]
      %v768 = vld [vmem:[%s756 + $0x2c] sm:$0xf]
      %v769 = vld [vmem:[%s756 + $0x30] sm:$0xf]
      %v770 = vld [vmem:[%s756 + $0x34] sm:$0xf]
      %v771 = vld [vmem:[%s756 + $0x38] sm:$0xf]
      %v772 = vld [vmem:[%s756 + $0x3c] sm:$0xf]
      %v773 = vpack.c.bf16 %v741, %v740
      %v774 = vpack.c.bf16 %v743, %v742
      %v775 = vpack.c.bf16 %v745, %v744
      %v776 = vpack.c.bf16 %v747, %v746
      %v777 = vpack.c.bf16 %v749, %v748
      %v778 = vpack.c.bf16 %v751, %v750
      %v779 = vpack.c.bf16 %v753, %v752
      %v780 = vpack.c.bf16 %v755, %v754
      %v781 = vld [vmem:[%s3 + $0x3] sm:$0x1]
      %v782 = vlaneseq
      %v783 = vshrl.u32 %v782, 7
      %v784 = vsub.s32 0, %v783
      %v785 = vrot.slane %v781, %v784
      %v802 = vunpack.c.l.b16 %v757
      %v803 = vunpack.c.l.b16 %v758
      %v804 = vunpack.c.l.b16 %v759
      %v805 = vunpack.c.l.b16 %v760
      %v806 = vunpack.c.l.b16 %v761
      %v807 = vunpack.c.l.b16 %v762
      %v808 = vunpack.c.l.b16 %v763
      %v809 = vunpack.c.l.b16 %v764
      %v810 = vunpack.c.l.b16 %v765
      %v811 = vunpack.c.l.b16 %v766
      %v812 = vunpack.c.l.b16 %v767
      %v813 = vunpack.c.l.b16 %v768
      %v814 = vunpack.c.l.b16 %v769
      %v815 = vunpack.c.l.b16 %v770
      %v816 = vunpack.c.l.b16 %v771
      %v817 = vunpack.c.l.b16 %v772
      %v818 = vpack.c.b16 %v803, %v802
      %v819 = vpack.c.b16 %v805, %v804
      %v820 = vpack.c.b16 %v807, %v806
      %v821 = vpack.c.b16 %v809, %v808
      %v822 = vpack.c.b16 %v811, %v810
      %v823 = vpack.c.b16 %v813, %v812
      %v824 = vpack.c.b16 %v815, %v814
      %v825 = vpack.c.b16 %v817, %v816
      %834 = vmatprep.subr.bf16.mxu0 0
      %835 = vmatpush1.bf16.msra.mxu0 %v818
      %836 = vmatprep.subr.bf16.mxu0 0
      %837 = vmatpush1.bf16.msra.mxu0 %v819
      %838 = vmatprep.subr.bf16.mxu0 0
      %839 = vmatpush1.bf16.msra.mxu0 %v820
      %840 = vmatprep.subr.bf16.mxu0 0
      %841 = vmatpush1.bf16.msra.mxu0 %v821
      %842 = vmatprep.subr.bf16.mxu0 0
      %843 = vmatpush1.bf16.msra.mxu0 %v822
      %844 = vmatprep.subr.bf16.mxu0 0
      %845 = vmatpush1.bf16.msra.mxu0 %v823
      %846 = vmatprep.subr.bf16.mxu0 0
      %847 = vmatpush1.bf16.msra.mxu0 %v824
      %848 = vmatprep.subr.bf16.mxu0 0
      %849 = vmatpush1.bf16.msra.mxu0 %v825
      %850 = vmatprep.subr.bf16.mxu0 0
      %851 = vmatpush1.bf16.msra.mxu0 0
      %852 = vmatprep.subr.bf16.mxu0 0
      %853 = vmatpush1.bf16.msra.mxu0 0
      %854 = vmatprep.subr.bf16.mxu0 0
      %855 = vmatpush1.bf16.msra.mxu0 0
      %856 = vmatprep.subr.bf16.mxu0 0
      %857 = vmatpush1.bf16.msra.mxu0 0
      %858 = vmatprep.subr.bf16.mxu0 0
      %859 = vmatpush1.bf16.msra.mxu0 0
      %860 = vmatprep.subr.bf16.mxu0 0
      %861 = vmatpush1.bf16.msra.mxu0 0
      %862 = vmatprep.subr.bf16.mxu0 0
      %863 = vmatpush1.bf16.msra.mxu0 0
      %864 = vmatprep.subr.bf16.mxu0 0
      %865 = vmatpush1.bf16.msra.mxu0 0
      %866 = vmatprep.mubr.bf16.mxu0 0
      %867 = vmatmul.mubr.bf16.gmra.mrb[0].mxu0 %v773
      %v868 = vpop.f32.mrb[0].mxu0
      %v869 = vadd.f32 %v785, %v868
      %v870 = vpop.f32.mrb[0].mxu0
      %v871 = vpop.f32.mrb[0].mxu0
      %v872 = vadd.f32 %v785, %v871
      %v873 = vpop.f32.mrb[0].mxu0
      %874 = vmatprep.mubr.bf16.mxu0 0
      %875 = vmatmul.mubr.bf16.gmra.mrb[0].mxu0 %v774
      %v876 = vpop.f32.mrb[0].mxu0
      %v877 = vadd.f32 %v785, %v876
      %v878 = vpop.f32.mrb[0].mxu0
      %v879 = vpop.f32.mrb[0].mxu0
      %v880 = vadd.f32 %v785, %v879
      %v881 = vpop.f32.mrb[0].mxu0
      %882 = vmatprep.mubr.bf16.mxu0 0
      %883 = vmatmul.mubr.bf16.gmra.mrb[0].mxu0 %v775
      %v884 = vpop.f32.mrb[0].mxu0
      %v885 = vadd.f32 %v785, %v884
      %v886 = vpop.f32.mrb[0].mxu0
      %v887 = vpop.f32.mrb[0].mxu0
      %v888 = vadd.f32 %v785, %v887
      %v889 = vpop.f32.mrb[0].mxu0
      %890 = vmatprep.mubr.bf16.mxu0 0
      %891 = vmatmul.mubr.bf16.gmra.mrb[0].mxu0 %v776
      %v892 = vpop.f32.mrb[0].mxu0
      %v893 = vadd.f32 %v785, %v892
      %v894 = vpop.f32.mrb[0].mxu0
      %v895 = vpop.f32.mrb[0].mxu0
      %v896 = vadd.f32 %v785, %v895
      %v897 = vpop.f32.mrb[0].mxu0
      %898 = vmatprep.mubr.bf16.mxu0 0
      %899 = vmatmul.mubr.bf16.gmra.mrb[0].mxu0 %v777
      %v900 = vpop.f32.mrb[0].mxu0
      %v901 = vadd.f32 %v785, %v900
      %v902 = vpop.f32.mrb[0].mxu0
      %v903 = vpop.f32.mrb[0].mxu0
      %v904 = vadd.f32 %v785, %v903
      %v905 = vpop.f32.mrb[0].mxu0
      %906 = vmatprep.mubr.bf16.mxu0 0
      %907 = vmatmul.mubr.bf16.gmra.mrb[0].mxu0 %v778
      %v908 = vpop.f32.mrb[0].mxu0
      %v909 = vadd.f32 %v785, %v908
      %v910 = vpop.f32.mrb[0].mxu0
      %v911 = vpop.f32.mrb[0].mxu0
      %v912 = vadd.f32 %v785, %v911
      %v913 = vpop.f32.mrb[0].mxu0
      %914 = vmatprep.mubr.bf16.mxu0 0
      %915 = vmatmul.mubr.bf16.gmra.mrb[0].mxu0 %v779
      %v916 = vpop.f32.mrb[0].mxu0
      %v917 = vadd.f32 %v785, %v916
      %v918 = vpop.f32.mrb[0].mxu0
      %v919 = vpop.f32.mrb[0].mxu0
      %v920 = vadd.f32 %v785, %v919
      %v921 = vpop.f32.mrb[0].mxu0
      %922 = vmatprep.mubr.bf16.mxu0 0
      %923 = vmatmul.mubr.bf16.gmra.mrb[0].mxu0 %v780
      %v924 = vpop.f32.mrb[0].mxu0
      %v925 = vadd.f32 %v785, %v924
      %v926 = vpop.f32.mrb[0].mxu0
      %v927 = vpop.f32.mrb[0].mxu0
      %v928 = vadd.f32 %v785, %v927
      %v929 = vpop.f32.mrb[0].mxu0
      %930 = vdwg.mxu0
      %v931 = vmax.f32 %v869, 0.0
      %v932 = vmax.f32 %v872, 0.0
      %v933 = vmax.f32 %v877, 0.0
      %v934 = vmax.f32 %v880, 0.0
      %v935 = vmax.f32 %v885, 0.0
      %v936 = vmax.f32 %v888, 0.0
      %v937 = vmax.f32 %v893, 0.0
      %v938 = vmax.f32 %v896, 0.0
      %v939 = vmax.f32 %v901, 0.0
      %v940 = vmax.f32 %v904, 0.0
      %v941 = vmax.f32 %v909, 0.0
      %v942 = vmax.f32 %v912, 0.0
      %v943 = vmax.f32 %v917, 0.0
      %v944 = vmax.f32 %v920, 0.0
      %v945 = vmax.f32 %v925, 0.0
      %v946 = vmax.f32 %v928, 0.0
      %s947 = scalar_lea.vmem %s2, 192
      %v948 = vld [vmem:[%s947] sm:$0xf]
      %v949 = vld [vmem:[%s947 + $0x4] sm:$0xf]
      %v950 = vld [vmem:[%s947 + $0x8] sm:$0xf]
      %v951 = vld [vmem:[%s947 + $0xc] sm:$0xf]
      %v952 = vld [vmem:[%s947 + $0x10] sm:$0xf]
      %v953 = vld [vmem:[%s947 + $0x14] sm:$0xf]
      %v954 = vld [vmem:[%s947 + $0x18] sm:$0xf]
      %v955 = vld [vmem:[%s947 + $0x1c] sm:$0xf]
      %v956 = vld [vmem:[%s947 + $0x20] sm:$0xf]
      %v957 = vld [vmem:[%s947 + $0x24] sm:$0xf]
      %v958 = vld [vmem:[%s947 + $0x28] sm:$0xf]
      %v959 = vld [vmem:[%s947 + $0x2c] sm:$0xf]
      %v960 = vld [vmem:[%s947 + $0x30] sm:$0xf]
      %v961 = vld [vmem:[%s947 + $0x34] sm:$0xf]
      %v962 = vld [vmem:[%s947 + $0x38] sm:$0xf]
      %v963 = vld [vmem:[%s947 + $0x3c] sm:$0xf]
      %v964 = vpack.c.bf16 %v932, %v931
      %v965 = vpack.c.bf16 %v934, %v933
      %v966 = vpack.c.bf16 %v936, %v935
      %v967 = vpack.c.bf16 %v938, %v937
      %v968 = vpack.c.bf16 %v940, %v939
      %v969 = vpack.c.bf16 %v942, %v941
      %v970 = vpack.c.bf16 %v944, %v943
      %v971 = vpack.c.bf16 %v946, %v945
      %v972 = vld [vmem:[%s3 + $0x4] sm:$0x1]
      %v973 = vlaneseq
      %v974 = vshrl.u32 %v973, 7
      %v975 = vsub.s32 0, %v974
      %v976 = vrot.slane %v972, %v975
      %v993 = vunpack.c.l.b16 %v948
      %v994 = vunpack.c.l.b16 %v949
      %v995 = vunpack.c.l.b16 %v950
      %v996 = vunpack.c.l.b16 %v951
      %v997 = vunpack.c.l.b16 %v952
      %v998 = vunpack.c.l.b16 %v953
      %v999 = vunpack.c.l.b16 %v954
      %v1000 = vunpack.c.l.b16 %v955
      %v1001 = vunpack.c.l.b16 %v956
      %v1002 = vunpack.c.l.b16 %v957
      %v1003 = vunpack.c.l.b16 %v958
      %v1004 = vunpack.c.l.b16 %v959
      %v1005 = vunpack.c.l.b16 %v960
      %v1006 = vunpack.c.l.b16 %v961
      %v1007 = vunpack.c.l.b16 %v962
      %v1008 = vunpack.c.l.b16 %v963
      %v1009 = vpack.c.b16 %v994, %v993
      %v1010 = vpack.c.b16 %v996, %v995
      %v1011 = vpack.c.b16 %v998, %v997
      %v1012 = vpack.c.b16 %v1000, %v999
      %v1013 = vpack.c.b16 %v1002, %v1001
      %v1014 = vpack.c.b16 %v1004, %v1003
      %v1015 = vpack.c.b16 %v1006, %v1005
      %v1016 = vpack.c.b16 %v1008, %v1007
      %1025 = vmatprep.subr.bf16.mxu0 0
      %1026 = vmatpush1.bf16.msra.mxu0 %v1009
      %1027 = vmatprep.subr.bf16.mxu0 0
      %1028 = vmatpush1.bf16.msra.mxu0 %v1010
      %1029 = vmatprep.subr.bf16.mxu0 0
      %1030 = vmatpush1.bf16.msra.mxu0 %v1011
      %1031 = vmatprep.subr.bf16.mxu0 0
      %1032 = vmatpush1.bf16.msra.mxu0 %v1012
      %1033 = vmatprep.subr.bf16.mxu0 0
      %1034 = vmatpush1.bf16.msra.mxu0 %v1013
      %1035 = vmatprep.subr.bf16.mxu0 0
      %1036 = vmatpush1.bf16.msra.mxu0 %v1014
      %1037 = vmatprep.subr.bf16.mxu0 0
      %1038 = vmatpush1.bf16.msra.mxu0 %v1015
      %1039 = vmatprep.subr.bf16.mxu0 0
      %1040 = vmatpush1.bf16.msra.mxu0 %v1016
      %1041 = vmatprep.subr.bf16.mxu0 0
      %1042 = vmatpush1.bf16.msra.mxu0 0
      %1043 = vmatprep.subr.bf16.mxu0 0
      %1044 = vmatpush1.bf16.msra.mxu0 0
      %1045 = vmatprep.subr.bf16.mxu0 0
      %1046 = vmatpush1.bf16.msra.mxu0 0
      %1047 = vmatprep.subr.bf16.mxu0 0
      %1048 = vmatpush1.bf16.msra.mxu0 0
      %1049 = vmatprep.subr.bf16.mxu0 0
      %1050 = vmatpush1.bf16.msra.mxu0 0
      %1051 = vmatprep.subr.bf16.mxu0 0
      %1052 = vmatpush1.bf16.msra.mxu0 0
      %1053 = vmatprep.subr.bf16.mxu0 0
      %1054 = vmatpush1.bf16.msra.mxu0 0
      %1055 = vmatprep.subr.bf16.mxu0 0
      %1056 = vmatpush1.bf16.msra.mxu0 0
      %1057 = vmatprep.mubr.bf16.mxu0 0
      %1058 = vmatmul.mubr.bf16.gmra.mrb[0].mxu0 %v964
      %v1059 = vpop.f32.mrb[0].mxu0
      %v1060 = vadd.f32 %v976, %v1059
      %v1061 = vpop.f32.mrb[0].mxu0
      %v1062 = vpop.f32.mrb[0].mxu0
      %v1063 = vadd.f32 %v976, %v1062
      %v1064 = vpop.f32.mrb[0].mxu0
      %1065 = vmatprep.mubr.bf16.mxu0 0
      %1066 = vmatmul.mubr.bf16.gmra.mrb[0].mxu0 %v965
      %v1067 = vpop.f32.mrb[0].mxu0
      %v1068 = vadd.f32 %v976, %v1067
      %v1069 = vpop.f32.mrb[0].mxu0
      %v1070 = vpop.f32.mrb[0].mxu0
      %v1071 = vadd.f32 %v976, %v1070
      %v1072 = vpop.f32.mrb[0].mxu0
      %1073 = vmatprep.mubr.bf16.mxu0 0
      %1074 = vmatmul.mubr.bf16.gmra.mrb[0].mxu0 %v966
      %v1075 = vpop.f32.mrb[0].mxu0
      %v1076 = vadd.f32 %v976, %v1075
      %v1077 = vpop.f32.mrb[0].mxu0
      %v1078 = vpop.f32.mrb[0].mxu0
      %v1079 = vadd.f32 %v976, %v1078
      %v1080 = vpop.f32.mrb[0].mxu0
      %1081 = vmatprep.mubr.bf16.mxu0 0
      %1082 = vmatmul.mubr.bf16.gmra.mrb[0].mxu0 %v967
      %v1083 = vpop.f32.mrb[0].mxu0
      %v1084 = vadd.f32 %v976, %v1083
      %v1085 = vpop.f32.mrb[0].mxu0
      %v1086 = vpop.f32.mrb[0].mxu0
      %v1087 = vadd.f32 %v976, %v1086
      %v1088 = vpop.f32.mrb[0].mxu0
      %1089 = vmatprep.mubr.bf16.mxu0 0
      %1090 = vmatmul.mubr.bf16.gmra.mrb[0].mxu0 %v968
      %v1091 = vpop.f32.mrb[0].mxu0
      %v1092 = vadd.f32 %v976, %v1091
      %v1093 = vpop.f32.mrb[0].mxu0
      %v1094 = vpop.f32.mrb[0].mxu0
      %v1095 = vadd.f32 %v976, %v1094
      %v1096 = vpop.f32.mrb[0].mxu0
      %1097 = vmatprep.mubr.bf16.mxu0 0
      %1098 = vmatmul.mubr.bf16.gmra.mrb[0].mxu0 %v969
      %v1099 = vpop.f32.mrb[0].mxu0
      %v1100 = vadd.f32 %v976, %v1099
      %v1101 = vpop.f32.mrb[0].mxu0
      %v1102 = vpop.f32.mrb[0].mxu0
      %v1103 = vadd.f32 %v976, %v1102
      %v1104 = vpop.f32.mrb[0].mxu0
      %1105 = vmatprep.mubr.bf16.mxu0 0
      %1106 = vmatmul.mubr.bf16.gmra.mrb[0].mxu0 %v970
      %v1107 = vpop.f32.mrb[0].mxu0
      %v1108 = vadd.f32 %v976, %v1107
      %v1109 = vpop.f32.mrb[0].mxu0
      %v1110 = vpop.f32.mrb[0].mxu0
      %v1111 = vadd.f32 %v976, %v1110
      %v1112 = vpop.f32.mrb[0].mxu0
      %1113 = vmatprep.mubr.bf16.mxu0 0
      %1114 = vmatmul.mubr.bf16.gmra.mrb[0].mxu0 %v971
      %v1115 = vpop.f32.mrb[0].mxu0
      %v1116 = vadd.f32 %v976, %v1115
      %v1117 = vpop.f32.mrb[0].mxu0
      %v1118 = vpop.f32.mrb[0].mxu0
      %v1119 = vadd.f32 %v976, %v1118
      %v1120 = vpop.f32.mrb[0].mxu0
      %1121 = vdwg.mxu0
      %v1122 = vmax.f32 %v1060, 0.0
      %v1123 = vmax.f32 %v1063, 0.0
      %v1124 = vmax.f32 %v1068, 0.0
      %v1125 = vmax.f32 %v1071, 0.0
      %v1126 = vmax.f32 %v1076, 0.0
      %v1127 = vmax.f32 %v1079, 0.0
      %v1128 = vmax.f32 %v1084, 0.0
      %v1129 = vmax.f32 %v1087, 0.0
      %v1130 = vmax.f32 %v1092, 0.0
      %v1131 = vmax.f32 %v1095, 0.0
      %v1132 = vmax.f32 %v1100, 0.0
      %v1133 = vmax.f32 %v1103, 0.0
      %v1134 = vmax.f32 %v1108, 0.0
      %v1135 = vmax.f32 %v1111, 0.0
      %v1136 = vmax.f32 %v1116, 0.0
      %v1137 = vmax.f32 %v1119, 0.0
      %s1138 = scalar_lea.vmem %s2, 256
      %v1139 = vld [vmem:[%s1138] sm:$0xf]
      %v1140 = vld [vmem:[%s1138 + $0x4] sm:$0xf]
      %v1141 = vld [vmem:[%s1138 + $0x8] sm:$0xf]
      %v1142 = vld [vmem:[%s1138 + $0xc] sm:$0xf]
      %v1143 = vld [vmem:[%s1138 + $0x10] sm:$0xf]
      %v1144 = vld [vmem:[%s1138 + $0x14] sm:$0xf]
      %v1145 = vld [vmem:[%s1138 + $0x18] sm:$0xf]
      %v1146 = vld [vmem:[%s1138 + $0x1c] sm:$0xf]
      %v1147 = vld [vmem:[%s1138 + $0x20] sm:$0xf]
      %v1148 = vld [vmem:[%s1138 + $0x24] sm:$0xf]
      %v1149 = vld [vmem:[%s1138 + $0x28] sm:$0xf]
      %v1150 = vld [vmem:[%s1138 + $0x2c] sm:$0xf]
      %v1151 = vld [vmem:[%s1138 + $0x30] sm:$0xf]
      %v1152 = vld [vmem:[%s1138 + $0x34] sm:$0xf]
      %v1153 = vld [vmem:[%s1138 + $0x38] sm:$0xf]
      %v1154 = vld [vmem:[%s1138 + $0x3c] sm:$0xf]
      %v1155 = vpack.c.bf16 %v1123, %v1122
      %v1156 = vpack.c.bf16 %v1125, %v1124
      %v1157 = vpack.c.bf16 %v1127, %v1126
      %v1158 = vpack.c.bf16 %v1129, %v1128
      %v1159 = vpack.c.bf16 %v1131, %v1130
      %v1160 = vpack.c.bf16 %v1133, %v1132
      %v1161 = vpack.c.bf16 %v1135, %v1134
      %v1162 = vpack.c.bf16 %v1137, %v1136
      %v1163 = vld [vmem:[%s3 + $0x5] sm:$0x1]
      %v1164 = vlaneseq
      %v1165 = vshrl.u32 %v1164, 7
      %v1166 = vsub.s32 0, %v1165
      %v1167 = vrot.slane %v1163, %v1166
      %v1184 = vunpack.c.l.b16 %v1139
      %v1185 = vunpack.c.l.b16 %v1140
      %v1186 = vunpack.c.l.b16 %v1141
      %v1187 = vunpack.c.l.b16 %v1142
      %v1188 = vunpack.c.l.b16 %v1143
      %v1189 = vunpack.c.l.b16 %v1144
      %v1190 = vunpack.c.l.b16 %v1145
      %v1191 = vunpack.c.l.b16 %v1146
      %v1192 = vunpack.c.l.b16 %v1147
      %v1193 = vunpack.c.l.b16 %v1148
      %v1194 = vunpack.c.l.b16 %v1149
      %v1195 = vunpack.c.l.b16 %v1150
      %v1196 = vunpack.c.l.b16 %v1151
      %v1197 = vunpack.c.l.b16 %v1152
      %v1198 = vunpack.c.l.b16 %v1153
      %v1199 = vunpack.c.l.b16 %v1154
      %v1200 = vpack.c.b16 %v1185, %v1184
      %v1201 = vpack.c.b16 %v1187, %v1186
      %v1202 = vpack.c.b16 %v1189, %v1188
      %v1203 = vpack.c.b16 %v1191, %v1190
      %v1204 = vpack.c.b16 %v1193, %v1192
      %v1205 = vpack.c.b16 %v1195, %v1194
      %v1206 = vpack.c.b16 %v1197, %v1196
      %v1207 = vpack.c.b16 %v1199, %v1198
      %1216 = vmatprep.subr.bf16.mxu0 0
      %1217 = vmatpush1.bf16.msra.mxu0 %v1200
      %1218 = vmatprep.subr.bf16.mxu0 0
      %1219 = vmatpush1.bf16.msra.mxu0 %v1201
      %1220 = vmatprep.subr.bf16.mxu0 0
      %1221 = vmatpush1.bf16.msra.mxu0 %v1202
      %1222 = vmatprep.subr.bf16.mxu0 0
      %1223 = vmatpush1.bf16.msra.mxu0 %v1203
      %1224 = vmatprep.subr.bf16.mxu0 0
      %1225 = vmatpush1.bf16.msra.mxu0 %v1204
      %1226 = vmatprep.subr.bf16.mxu0 0
      %1227 = vmatpush1.bf16.msra.mxu0 %v1205
      %1228 = vmatprep.subr.bf16.mxu0 0
      %1229 = vmatpush1.bf16.msra.mxu0 %v1206
      %1230 = vmatprep.subr.bf16.mxu0 0
      %1231 = vmatpush1.bf16.msra.mxu0 %v1207
      %1232 = vmatprep.subr.bf16.mxu0 0
      %1233 = vmatpush1.bf16.msra.mxu0 0
      %1234 = vmatprep.subr.bf16.mxu0 0
      %1235 = vmatpush1.bf16.msra.mxu0 0
      %1236 = vmatprep.subr.bf16.mxu0 0
      %1237 = vmatpush1.bf16.msra.mxu0 0
      %1238 = vmatprep.subr.bf16.mxu0 0
      %1239 = vmatpush1.bf16.msra.mxu0 0
      %1240 = vmatprep.subr.bf16.mxu0 0
      %1241 = vmatpush1.bf16.msra.mxu0 0
      %1242 = vmatprep.subr.bf16.mxu0 0
      %1243 = vmatpush1.bf16.msra.mxu0 0
      %1244 = vmatprep.subr.bf16.mxu0 0
      %1245 = vmatpush1.bf16.msra.mxu0 0
      %1246 = vmatprep.subr.bf16.mxu0 0
      %1247 = vmatpush1.bf16.msra.mxu0 0
      %1248 = vmatprep.mubr.bf16.mxu0 0
      %1249 = vmatmul.mubr.bf16.gmra.mrb[0].mxu0 %v1155
      %v1250 = vpop.f32.mrb[0].mxu0
      %v1251 = vadd.f32 %v1167, %v1250
      %v1252 = vpop.f32.mrb[0].mxu0
      %v1253 = vpop.f32.mrb[0].mxu0
      %v1254 = vadd.f32 %v1167, %v1253
      %v1255 = vpop.f32.mrb[0].mxu0
      %1256 = vmatprep.mubr.bf16.mxu0 0
      %1257 = vmatmul.mubr.bf16.gmra.mrb[0].mxu0 %v1156
      %v1258 = vpop.f32.mrb[0].mxu0
      %v1259 = vadd.f32 %v1167, %v1258
      %v1260 = vpop.f32.mrb[0].mxu0
      %v1261 = vpop.f32.mrb[0].mxu0
      %v1262 = vadd.f32 %v1167, %v1261
      %v1263 = vpop.f32.mrb[0].mxu0
      %1264 = vmatprep.mubr.bf16.mxu0 0
      %1265 = vmatmul.mubr.bf16.gmra.mrb[0].mxu0 %v1157
      %v1266 = vpop.f32.mrb[0].mxu0
      %v1267 = vadd.f32 %v1167, %v1266
      %v1268 = vpop.f32.mrb[0].mxu0
      %v1269 = vpop.f32.mrb[0].mxu0
      %v1270 = vadd.f32 %v1167, %v1269
      %v1271 = vpop.f32.mrb[0].mxu0
      %1272 = vmatprep.mubr.bf16.mxu0 0
      %1273 = vmatmul.mubr.bf16.gmra.mrb[0].mxu0 %v1158
      %v1274 = vpop.f32.mrb[0].mxu0
      %v1275 = vadd.f32 %v1167, %v1274
      %v1276 = vpop.f32.mrb[0].mxu0
      %v1277 = vpop.f32.mrb[0].mxu0
      %v1278 = vadd.f32 %v1167, %v1277
      %v1279 = vpop.f32.mrb[0].mxu0
      %1280 = vmatprep.mubr.bf16.mxu0 0
      %1281 = vmatmul.mubr.bf16.gmra.mrb[0].mxu0 %v1159
      %v1282 = vpop.f32.mrb[0].mxu0
      %v1283 = vadd.f32 %v1167, %v1282
      %v1284 = vpop.f32.mrb[0].mxu0
      %v1285 = vpop.f32.mrb[0].mxu0
      %v1286 = vadd.f32 %v1167, %v1285
      %v1287 = vpop.f32.mrb[0].mxu0
      %1288 = vmatprep.mubr.bf16.mxu0 0
      %1289 = vmatmul.mubr.bf16.gmra.mrb[0].mxu0 %v1160
      %v1290 = vpop.f32.mrb[0].mxu0
      %v1291 = vadd.f32 %v1167, %v1290
      %v1292 = vpop.f32.mrb[0].mxu0
      %v1293 = vpop.f32.mrb[0].mxu0
      %v1294 = vadd.f32 %v1167, %v1293
      %v1295 = vpop.f32.mrb[0].mxu0
      %1296 = vmatprep.mubr.bf16.mxu0 0
      %1297 = vmatmul.mubr.bf16.gmra.mrb[0].mxu0 %v1161
      %v1298 = vpop.f32.mrb[0].mxu0
      %v1299 = vadd.f32 %v1167, %v1298
      %v1300 = vpop.f32.mrb[0].mxu0
      %v1301 = vpop.f32.mrb[0].mxu0
      %v1302 = vadd.f32 %v1167, %v1301
      %v1303 = vpop.f32.mrb[0].mxu0
      %1304 = vmatprep.mubr.bf16.mxu0 0
      %1305 = vmatmul.mubr.bf16.gmra.mrb[0].mxu0 %v1162
      %v1306 = vpop.f32.mrb[0].mxu0
      %v1307 = vadd.f32 %v1167, %v1306
      %v1308 = vpop.f32.mrb[0].mxu0
      %v1309 = vpop.f32.mrb[0].mxu0
      %v1310 = vadd.f32 %v1167, %v1309
      %v1311 = vpop.f32.mrb[0].mxu0
      %1312 = vdwg.mxu0
      %v1313 = vmax.f32 %v1251, 0.0
      %v1314 = vmax.f32 %v1254, 0.0
      %v1315 = vmax.f32 %v1259, 0.0
      %v1316 = vmax.f32 %v1262, 0.0
      %v1317 = vmax.f32 %v1267, 0.0
      %v1318 = vmax.f32 %v1270, 0.0
      %v1319 = vmax.f32 %v1275, 0.0
      %v1320 = vmax.f32 %v1278, 0.0
      %v1321 = vmax.f32 %v1283, 0.0
      %v1322 = vmax.f32 %v1286, 0.0
      %v1323 = vmax.f32 %v1291, 0.0
      %v1324 = vmax.f32 %v1294, 0.0
      %v1325 = vmax.f32 %v1299, 0.0
      %v1326 = vmax.f32 %v1302, 0.0
      %v1327 = vmax.f32 %v1307, 0.0
      %v1328 = vmax.f32 %v1310, 0.0
      %s1329 = scalar_lea.vmem %s2, 320
      %v1330 = vld [vmem:[%s1329] sm:$0xf]
      %v1331 = vld [vmem:[%s1329 + $0x4] sm:$0xf]
      %v1332 = vld [vmem:[%s1329 + $0x8] sm:$0xf]
      %v1333 = vld [vmem:[%s1329 + $0xc] sm:$0xf]
      %v1334 = vld [vmem:[%s1329 + $0x10] sm:$0xf]
      %v1335 = vld [vmem:[%s1329 + $0x14] sm:$0xf]
      %v1336 = vld [vmem:[%s1329 + $0x18] sm:$0xf]
      %v1337 = vld [vmem:[%s1329 + $0x1c] sm:$0xf]
      %v1338 = vld [vmem:[%s1329 + $0x20] sm:$0xf]
      %v1339 = vld [vmem:[%s1329 + $0x24] sm:$0xf]
      %v1340 = vld [vmem:[%s1329 + $0x28] sm:$0xf]
      %v1341 = vld [vmem:[%s1329 + $0x2c] sm:$0xf]
      %v1342 = vld [vmem:[%s1329 + $0x30] sm:$0xf]
      %v1343 = vld [vmem:[%s1329 + $0x34] sm:$0xf]
      %v1344 = vld [vmem:[%s1329 + $0x38] sm:$0xf]
      %v1345 = vld [vmem:[%s1329 + $0x3c] sm:$0xf]
      %v1346 = vpack.c.bf16 %v1314, %v1313
      %v1347 = vpack.c.bf16 %v1316, %v1315
      %v1348 = vpack.c.bf16 %v1318, %v1317
      %v1349 = vpack.c.bf16 %v1320, %v1319
      %v1350 = vpack.c.bf16 %v1322, %v1321
      %v1351 = vpack.c.bf16 %v1324, %v1323
      %v1352 = vpack.c.bf16 %v1326, %v1325
      %v1353 = vpack.c.bf16 %v1328, %v1327
      %v1354 = vld [vmem:[%s3 + $0x6] sm:$0x1]
      %v1355 = vlaneseq
      %v1356 = vshrl.u32 %v1355, 7
      %v1357 = vsub.s32 0, %v1356
      %v1358 = vrot.slane %v1354, %v1357
      %v1375 = vunpack.c.l.b16 %v1330
      %v1376 = vunpack.c.l.b16 %v1331
      %v1377 = vunpack.c.l.b16 %v1332
      %v1378 = vunpack.c.l.b16 %v1333
      %v1379 = vunpack.c.l.b16 %v1334
      %v1380 = vunpack.c.l.b16 %v1335
      %v1381 = vunpack.c.l.b16 %v1336
      %v1382 = vunpack.c.l.b16 %v1337
      %v1383 = vunpack.c.l.b16 %v1338
      %v1384 = vunpack.c.l.b16 %v1339
      %v1385 = vunpack.c.l.b16 %v1340
      %v1386 = vunpack.c.l.b16 %v1341
      %v1387 = vunpack.c.l.b16 %v1342
      %v1388 = vunpack.c.l.b16 %v1343
      %v1389 = vunpack.c.l.b16 %v1344
      %v1390 = vunpack.c.l.b16 %v1345
      %v1391 = vpack.c.b16 %v1376, %v1375
      %v1392 = vpack.c.b16 %v1378, %v1377
      %v1393 = vpack.c.b16 %v1380, %v1379
      %v1394 = vpack.c.b16 %v1382, %v1381
      %v1395 = vpack.c.b16 %v1384, %v1383
      %v1396 = vpack.c.b16 %v1386, %v1385
      %v1397 = vpack.c.b16 %v1388, %v1387
      %v1398 = vpack.c.b16 %v1390, %v1389
      %1407 = vmatprep.subr.bf16.mxu0 0
      %1408 = vmatpush1.bf16.msra.mxu0 %v1391
      %1409 = vmatprep.subr.bf16.mxu0 0
      %1410 = vmatpush1.bf16.msra.mxu0 %v1392
      %1411 = vmatprep.subr.bf16.mxu0 0
      %1412 = vmatpush1.bf16.msra.mxu0 %v1393
      %1413 = vmatprep.subr.bf16.mxu0 0
      %1414 = vmatpush1.bf16.msra.mxu0 %v1394
      %1415 = vmatprep.subr.bf16.mxu0 0
      %1416 = vmatpush1.bf16.msra.mxu0 %v1395
      %1417 = vmatprep.subr.bf16.mxu0 0
      %1418 = vmatpush1.bf16.msra.mxu0 %v1396
      %1419 = vmatprep.subr.bf16.mxu0 0
      %1420 = vmatpush1.bf16.msra.mxu0 %v1397
      %1421 = vmatprep.subr.bf16.mxu0 0
      %1422 = vmatpush1.bf16.msra.mxu0 %v1398
      %1423 = vmatprep.subr.bf16.mxu0 0
      %1424 = vmatpush1.bf16.msra.mxu0 0
      %1425 = vmatprep.subr.bf16.mxu0 0
      %1426 = vmatpush1.bf16.msra.mxu0 0
      %1427 = vmatprep.subr.bf16.mxu0 0
      %1428 = vmatpush1.bf16.msra.mxu0 0
      %1429 = vmatprep.subr.bf16.mxu0 0
      %1430 = vmatpush1.bf16.msra.mxu0 0
      %1431 = vmatprep.subr.bf16.mxu0 0
      %1432 = vmatpush1.bf16.msra.mxu0 0
      %1433 = vmatprep.subr.bf16.mxu0 0
      %1434 = vmatpush1.bf16.msra.mxu0 0
      %1435 = vmatprep.subr.bf16.mxu0 0
      %1436 = vmatpush1.bf16.msra.mxu0 0
      %1437 = vmatprep.subr.bf16.mxu0 0
      %1438 = vmatpush1.bf16.msra.mxu0 0
      %1439 = vmatprep.mubr.bf16.mxu0 0
      %1440 = vmatmul.mubr.bf16.gmra.mrb[0].mxu0 %v1346
      %v1441 = vpop.f32.mrb[0].mxu0
      %v1442 = vadd.f32 %v1358, %v1441
      %v1443 = vpop.f32.mrb[0].mxu0
      %v1444 = vpop.f32.mrb[0].mxu0
      %v1445 = vadd.f32 %v1358, %v1444
      %v1446 = vpop.f32.mrb[0].mxu0
      %1447 = vmatprep.mubr.bf16.mxu0 0
      %1448 = vmatmul.mubr.bf16.gmra.mrb[0].mxu0 %v1347
      %v1449 = vpop.f32.mrb[0].mxu0
      %v1450 = vadd.f32 %v1358, %v1449
      %v1451 = vpop.f32.mrb[0].mxu0
      %v1452 = vpop.f32.mrb[0].mxu0
      %v1453 = vadd.f32 %v1358, %v1452
      %v1454 = vpop.f32.mrb[0].mxu0
      %1455 = vmatprep.mubr.bf16.mxu0 0
      %1456 = vmatmul.mubr.bf16.gmra.mrb[0].mxu0 %v1348
      %v1457 = vpop.f32.mrb[0].mxu0
      %v1458 = vadd.f32 %v1358, %v1457
      %v1459 = vpop.f32.mrb[0].mxu0
      %v1460 = vpop.f32.mrb[0].mxu0
      %v1461 = vadd.f32 %v1358, %v1460
      %v1462 = vpop.f32.mrb[0].mxu0
      %1463 = vmatprep.mubr.bf16.mxu0 0
      %1464 = vmatmul.mubr.bf16.gmra.mrb[0].mxu0 %v1349
      %v1465 = vpop.f32.mrb[0].mxu0
      %v1466 = vadd.f32 %v1358, %v1465
      %v1467 = vpop.f32.mrb[0].mxu0
      %v1468 = vpop.f32.mrb[0].mxu0
      %v1469 = vadd.f32 %v1358, %v1468
      %v1470 = vpop.f32.mrb[0].mxu0
      %1471 = vmatprep.mubr.bf16.mxu0 0
      %1472 = vmatmul.mubr.bf16.gmra.mrb[0].mxu0 %v1350
      %v1473 = vpop.f32.mrb[0].mxu0
      %v1474 = vadd.f32 %v1358, %v1473
      %v1475 = vpop.f32.mrb[0].mxu0
      %v1476 = vpop.f32.mrb[0].mxu0
      %v1477 = vadd.f32 %v1358, %v1476
      %v1478 = vpop.f32.mrb[0].mxu0
      %1479 = vmatprep.mubr.bf16.mxu0 0
      %1480 = vmatmul.mubr.bf16.gmra.mrb[0].mxu0 %v1351
      %v1481 = vpop.f32.mrb[0].mxu0
      %v1482 = vadd.f32 %v1358, %v1481
      %v1483 = vpop.f32.mrb[0].mxu0
      %v1484 = vpop.f32.mrb[0].mxu0
      %v1485 = vadd.f32 %v1358, %v1484
      %v1486 = vpop.f32.mrb[0].mxu0
      %1487 = vmatprep.mubr.bf16.mxu0 0
      %1488 = vmatmul.mubr.bf16.gmra.mrb[0].mxu0 %v1352
      %v1489 = vpop.f32.mrb[0].mxu0
      %v1490 = vadd.f32 %v1358, %v1489
      %v1491 = vpop.f32.mrb[0].mxu0
      %v1492 = vpop.f32.mrb[0].mxu0
      %v1493 = vadd.f32 %v1358, %v1492
      %v1494 = vpop.f32.mrb[0].mxu0
      %1495 = vmatprep.mubr.bf16.mxu0 0
      %1496 = vmatmul.mubr.bf16.gmra.mrb[0].mxu0 %v1353
      %v1497 = vpop.f32.mrb[0].mxu0
      %v1498 = vadd.f32 %v1358, %v1497
      %v1499 = vpop.f32.mrb[0].mxu0
      %v1500 = vpop.f32.mrb[0].mxu0
      %v1501 = vadd.f32 %v1358, %v1500
      %v1502 = vpop.f32.mrb[0].mxu0
      %1503 = vdwg.mxu0
      %v1504 = vmax.f32 %v1442, 0.0
      %v1505 = vmax.f32 %v1445, 0.0
      %v1506 = vmax.f32 %v1450, 0.0
      %v1507 = vmax.f32 %v1453, 0.0
      %v1508 = vmax.f32 %v1458, 0.0
      %v1509 = vmax.f32 %v1461, 0.0
      %v1510 = vmax.f32 %v1466, 0.0
      %v1511 = vmax.f32 %v1469, 0.0
      %v1512 = vmax.f32 %v1474, 0.0
      %v1513 = vmax.f32 %v1477, 0.0
      %v1514 = vmax.f32 %v1482, 0.0
      %v1515 = vmax.f32 %v1485, 0.0
      %v1516 = vmax.f32 %v1490, 0.0
      %v1517 = vmax.f32 %v1493, 0.0
      %v1518 = vmax.f32 %v1498, 0.0
      %v1519 = vmax.f32 %v1501, 0.0
      %s1520 = scalar_lea.vmem %s2, 384
      %v1521 = vld [vmem:[%s1520] sm:$0xf]
      %v1522 = vld [vmem:[%s1520 + $0x4] sm:$0xf]
      %v1523 = vld [vmem:[%s1520 + $0x8] sm:$0xf]
      %v1524 = vld [vmem:[%s1520 + $0xc] sm:$0xf]
      %v1525 = vld [vmem:[%s1520 + $0x10] sm:$0xf]
      %v1526 = vld [vmem:[%s1520 + $0x14] sm:$0xf]
      %v1527 = vld [vmem:[%s1520 + $0x18] sm:$0xf]
      %v1528 = vld [vmem:[%s1520 + $0x1c] sm:$0xf]
      %v1529 = vld [vmem:[%s1520 + $0x20] sm:$0xf]
      %v1530 = vld [vmem:[%s1520 + $0x24] sm:$0xf]
      %v1531 = vld [vmem:[%s1520 + $0x28] sm:$0xf]
      %v1532 = vld [vmem:[%s1520 + $0x2c] sm:$0xf]
      %v1533 = vld [vmem:[%s1520 + $0x30] sm:$0xf]
      %v1534 = vld [vmem:[%s1520 + $0x34] sm:$0xf]
      %v1535 = vld [vmem:[%s1520 + $0x38] sm:$0xf]
      %v1536 = vld [vmem:[%s1520 + $0x3c] sm:$0xf]
      %v1537 = vpack.c.bf16 %v1505, %v1504
      %v1538 = vpack.c.bf16 %v1507, %v1506
      %v1539 = vpack.c.bf16 %v1509, %v1508
      %v1540 = vpack.c.bf16 %v1511, %v1510
      %v1541 = vpack.c.bf16 %v1513, %v1512
      %v1542 = vpack.c.bf16 %v1515, %v1514
      %v1543 = vpack.c.bf16 %v1517, %v1516
      %v1544 = vpack.c.bf16 %v1519, %v1518
      %v1545 = vld [vmem:[%s3 + $0x7] sm:$0x1]
      %v1546 = vlaneseq
      %v1547 = vshrl.u32 %v1546, 7
      %v1548 = vsub.s32 0, %v1547
      %v1549 = vrot.slane %v1545, %v1548
      %v1566 = vunpack.c.l.b16 %v1521
      %v1567 = vunpack.c.l.b16 %v1522
      %v1568 = vunpack.c.l.b16 %v1523
      %v1569 = vunpack.c.l.b16 %v1524
      %v1570 = vunpack.c.l.b16 %v1525
      %v1571 = vunpack.c.l.b16 %v1526
      %v1572 = vunpack.c.l.b16 %v1527
      %v1573 = vunpack.c.l.b16 %v1528
      %v1574 = vunpack.c.l.b16 %v1529
      %v1575 = vunpack.c.l.b16 %v1530
      %v1576 = vunpack.c.l.b16 %v1531
      %v1577 = vunpack.c.l.b16 %v1532
      %v1578 = vunpack.c.l.b16 %v1533
      %v1579 = vunpack.c.l.b16 %v1534
      %v1580 = vunpack.c.l.b16 %v1535
      %v1581 = vunpack.c.l.b16 %v1536
      %v1582 = vpack.c.b16 %v1567, %v1566
      %v1583 = vpack.c.b16 %v1569, %v1568
      %v1584 = vpack.c.b16 %v1571, %v1570
      %v1585 = vpack.c.b16 %v1573, %v1572
      %v1586 = vpack.c.b16 %v1575, %v1574
      %v1587 = vpack.c.b16 %v1577, %v1576
      %v1588 = vpack.c.b16 %v1579, %v1578
      %v1589 = vpack.c.b16 %v1581, %v1580
      %1598 = vmatprep.subr.bf16.mxu0 0
      %1599 = vmatpush1.bf16.msra.mxu0 %v1582
      %1600 = vmatprep.subr.bf16.mxu0 0
      %1601 = vmatpush1.bf16.msra.mxu0 %v1583
      %1602 = vmatprep.subr.bf16.mxu0 0
      %1603 = vmatpush1.bf16.msra.mxu0 %v1584
      %1604 = vmatprep.subr.bf16.mxu0 0
      %1605 = vmatpush1.bf16.msra.mxu0 %v1585
      %1606 = vmatprep.subr.bf16.mxu0 0
      %1607 = vmatpush1.bf16.msra.mxu0 %v1586
      %1608 = vmatprep.subr.bf16.mxu0 0
      %1609 = vmatpush1.bf16.msra.mxu0 %v1587
      %1610 = vmatprep.subr.bf16.mxu0 0
      %1611 = vmatpush1.bf16.msra.mxu0 %v1588
      %1612 = vmatprep.subr.bf16.mxu0 0
      %1613 = vmatpush1.bf16.msra.mxu0 %v1589
      %1614 = vmatprep.subr.bf16.mxu0 0
      %1615 = vmatpush1.bf16.msra.mxu0 0
      %1616 = vmatprep.subr.bf16.mxu0 0
      %1617 = vmatpush1.bf16.msra.mxu0 0
      %1618 = vmatprep.subr.bf16.mxu0 0
      %1619 = vmatpush1.bf16.msra.mxu0 0
      %1620 = vmatprep.subr.bf16.mxu0 0
      %1621 = vmatpush1.bf16.msra.mxu0 0
      %1622 = vmatprep.subr.bf16.mxu0 0
      %1623 = vmatpush1.bf16.msra.mxu0 0
      %1624 = vmatprep.subr.bf16.mxu0 0
      %1625 = vmatpush1.bf16.msra.mxu0 0
      %1626 = vmatprep.subr.bf16.mxu0 0
      %1627 = vmatpush1.bf16.msra.mxu0 0
      %1628 = vmatprep.subr.bf16.mxu0 0
      %1629 = vmatpush1.bf16.msra.mxu0 0
      %1630 = vmatprep.mubr.bf16.mxu0 0
      %1631 = vmatmul.mubr.bf16.gmra.mrb[0].mxu0 %v1537
      %v1632 = vpop.f32.mrb[0].mxu0
      %v1633 = vadd.f32 %v1549, %v1632
      %v1634 = vpop.f32.mrb[0].mxu0
      %v1635 = vpop.f32.mrb[0].mxu0
      %v1636 = vadd.f32 %v1549, %v1635
      %v1637 = vpop.f32.mrb[0].mxu0
      %1638 = vmatprep.mubr.bf16.mxu0 0
      %1639 = vmatmul.mubr.bf16.gmra.mrb[0].mxu0 %v1538
      %v1640 = vpop.f32.mrb[0].mxu0
      %v1641 = vadd.f32 %v1549, %v1640
      %v1642 = vpop.f32.mrb[0].mxu0
      %v1643 = vpop.f32.mrb[0].mxu0
      %v1644 = vadd.f32 %v1549, %v1643
      %v1645 = vpop.f32.mrb[0].mxu0
      %1646 = vmatprep.mubr.bf16.mxu0 0
      %1647 = vmatmul.mubr.bf16.gmra.mrb[0].mxu0 %v1539
      %v1648 = vpop.f32.mrb[0].mxu0
      %v1649 = vadd.f32 %v1549, %v1648
      %v1650 = vpop.f32.mrb[0].mxu0
      %v1651 = vpop.f32.mrb[0].mxu0
      %v1652 = vadd.f32 %v1549, %v1651
      %v1653 = vpop.f32.mrb[0].mxu0
      %1654 = vmatprep.mubr.bf16.mxu0 0
      %1655 = vmatmul.mubr.bf16.gmra.mrb[0].mxu0 %v1540
      %v1656 = vpop.f32.mrb[0].mxu0
      %v1657 = vadd.f32 %v1549, %v1656
      %v1658 = vpop.f32.mrb[0].mxu0
      %v1659 = vpop.f32.mrb[0].mxu0
      %v1660 = vadd.f32 %v1549, %v1659
      %v1661 = vpop.f32.mrb[0].mxu0
      %1662 = vmatprep.mubr.bf16.mxu0 0
      %1663 = vmatmul.mubr.bf16.gmra.mrb[0].mxu0 %v1541
      %v1664 = vpop.f32.mrb[0].mxu0
      %v1665 = vadd.f32 %v1549, %v1664
      %v1666 = vpop.f32.mrb[0].mxu0
      %v1667 = vpop.f32.mrb[0].mxu0
      %v1668 = vadd.f32 %v1549, %v1667
      %v1669 = vpop.f32.mrb[0].mxu0
      %1670 = vmatprep.mubr.bf16.mxu0 0
      %1671 = vmatmul.mubr.bf16.gmra.mrb[0].mxu0 %v1542
      %v1672 = vpop.f32.mrb[0].mxu0
      %v1673 = vadd.f32 %v1549, %v1672
      %v1674 = vpop.f32.mrb[0].mxu0
      %v1675 = vpop.f32.mrb[0].mxu0
      %v1676 = vadd.f32 %v1549, %v1675
      %v1677 = vpop.f32.mrb[0].mxu0
      %1678 = vmatprep.mubr.bf16.mxu0 0
      %1679 = vmatmul.mubr.bf16.gmra.mrb[0].mxu0 %v1543
      %v1680 = vpop.f32.mrb[0].mxu0
      %v1681 = vadd.f32 %v1549, %v1680
      %v1682 = vpop.f32.mrb[0].mxu0
      %v1683 = vpop.f32.mrb[0].mxu0
      %v1684 = vadd.f32 %v1549, %v1683
      %v1685 = vpop.f32.mrb[0].mxu0
      %1686 = vmatprep.mubr.bf16.mxu0 0
      %1687 = vmatmul.mubr.bf16.gmra.mrb[0].mxu0 %v1544
      %v1688 = vpop.f32.mrb[0].mxu0
      %v1689 = vadd.f32 %v1549, %v1688
      %v1690 = vpop.f32.mrb[0].mxu0
      %v1691 = vpop.f32.mrb[0].mxu0
      %v1692 = vadd.f32 %v1549, %v1691
      %v1693 = vpop.f32.mrb[0].mxu0
      %1694 = vdwg.mxu0
      %vm1695 = vcmask 31744
      %1696 = vst.msk [vmem:[%s199] sm:$0xff] %vm1695, %v1633
      %1697 = vst.msk [vmem:[%s199 + $0x8] sm:$0xff] %vm1695, %v1636
      %1698 = vst.msk [vmem:[%s199 + $0x10] sm:$0xff] %vm1695, %v1641
      %1699 = vst.msk [vmem:[%s199 + $0x18] sm:$0xff] %vm1695, %v1644
      %1700 = vst.msk [vmem:[%s199 + $0x20] sm:$0xff] %vm1695, %v1649
      %1701 = vst.msk [vmem:[%s199 + $0x28] sm:$0xff] %vm1695, %v1652
      %1702 = vst.msk [vmem:[%s199 + $0x30] sm:$0xff] %vm1695, %v1657
      %1703 = vst.msk [vmem:[%s199 + $0x38] sm:$0xff] %vm1695, %v1660
      %1704 = vst.msk [vmem:[%s199 + $0x40] sm:$0xff] %vm1695, %v1665
      %1705 = vst.msk [vmem:[%s199 + $0x48] sm:$0xff] %vm1695, %v1668
      %1706 = vst.msk [vmem:[%s199 + $0x50] sm:$0xff] %vm1695, %v1673
      %1707 = vst.msk [vmem:[%s199 + $0x58] sm:$0xff] %vm1695, %v1676
      %1708 = vst.msk [vmem:[%s199 + $0x60] sm:$0xff] %vm1695, %v1681
      %1709 = vst.msk [vmem:[%s199 + $0x68] sm:$0xff] %vm1695, %v1684
      %1710 = vst.msk [vmem:[%s199 + $0x70] sm:$0xff] %vm1695, %v1689
      %1711 = vst.msk [vmem:[%s199 + $0x78] sm:$0xff] %vm1695, %v1692
      %s1712 = smul.u32 16, %s15
      %p1713 = scmp.lt.s32.totalorder %s1712, 31
      %s1714 = scalar_select %p1713, %s1712, 31
      %s1715 = smul.addr %s1714, 8
      %s1716 = scalar_lea.vmem %s4, %s1715
      // Predicated region
      $region37: #{qnetwork_forward.1} parent=35 // pred_check
        %p1717 = pneg %p122
      $region38: #{qnetwork_forward.1} parent=35 // pred_check_branch
        %1719 = sbr.rel (%p1717) target = $region40
      $region39: #{qnetwork_forward.1} parent=35 // pred_region
        %s1720 = smul.u32 16, %s15
      $region40: #{qnetwork_forward.1} parent=35 // pred_fallthru
        _
    $region36: #{qnetwork_forward.1} parent=5 // pred_fallthru
      _
    %p1721 = scmp.le.s32.totalorder 2, %s10
    // Predicated region
    $region41: #{qnetwork_forward.1} parent=5 // pred_check
      %p1722 = pneg %p1721
    $region42: #{qnetwork_forward.1} parent=5 // pred_check_branch
      %1724 = sbr.rel (%p1722) target = $region44
    $region43: #{qnetwork_forward.1} parent=5 // pred_region
      %s1725 = ssub.s32 %s10, 2
      // Predicated region
      $region45: #{qnetwork_forward.1} parent=43 // pred_check
        %p1726 = pneg %p128
      $region46: #{qnetwork_forward.1} parent=43 // pred_check_branch
        %1728 = sbr.rel (%p1726) target = $region48
      $region47: #{qnetwork_forward.1} parent=43 // pred_region
        %s1729 = smul.u32 16, %s16
        %p1730 = scmp.lt.s32.totalorder %s1729, 31
        %s1731 = scalar_select %p1730, %s1729, 31
        %s1732 = smul.addr %s1731, 8
        %s1733 = scalar_lea.vmem %s4, %s1732
      $region48: #{qnetwork_forward.1} parent=43 // pred_fallthru
        _
    $region44: #{qnetwork_forward.1} parent=5 // pred_fallthru
      _
  $region6: #{qnetwork_forward.1} parent=0 // loop_footer
    %s14 = sadd.s32 1, %s10
  $region7: #{qnetwork_forward.1} parent=0 // loop_footer_branch
    %9 = sbr.rel target = $region3
  $region8: #{qnetwork_forward.1} parent=0 // loop_exit
    _

</llo_original>
